<compile_context>
chip_gen: v7x
topology: tpu7x:2x2x1
jax: 0.10.0
libtpu: 0.0.40
codegen_flags: <defaults>
</compile_context>

<pallas_src>
import math

import jax
import jax.numpy as jnp
from jax.experimental import pallas as pl
from jax.experimental.pallas import tpu as pltpu

A_DIM = 6          # action dim (linear4 output)
S0, S1 = 6, 8      # Pensieve state shape -> 128*(1+1+5+5+3+1) = 2048 features into linear3
HID = 128
CONV_K = 4
T5_OUT = S1 - CONV_K + 1      # 5
T3_OUT = A_DIM - CONV_K + 1   # 3


# ----------------------------------------------------------------------------- kernel
def actor_kernel(x0_ref, x1_ref, x5_ref, r2_ref, r3_ref, r4_ref,
                 w0_ref, b0_ref, w1_ref, b1_ref, w25_ref,
                 t5_ref, bc5_ref, t3_ref, bc3_ref,
                 w3_ref, b3_ref, w4_ref, b4_ref, o_ref):
    TB = r2_ref.shape[0]
    bf16 = jnp.bfloat16

    # linear0 / linear1 + ReLU as VPU broadcast multiplies (no MXU push for K=1).
    s0 = jnp.maximum(x0_ref[...] * w0_ref[...] + b0_ref[...], 0.0)      # [TB,128] f32
    s1 = jnp.maximum(x1_ref[...] * w1_ref[...] + b1_ref[...], 0.0)      # [TB,128] f32

    # Conv1d(1,128,4)+ReLU for state rows 2 & 3: one stacked lane-dense matmul
    # against the Toeplitz-expanded weight (time-major flatten).
    r23 = jnp.concatenate([r2_ref[...], r3_ref[...]], axis=0).astype(bf16)   # [2TB,8]
    y23 = jnp.dot(r23, t5_ref[...], preferred_element_type=jnp.float32) + bc5_ref[...]
    y23 = jnp.maximum(y23, 0.0)                                          # [2TB,640]
    s2 = y23[:TB]
    s3 = y23[TB:]

    # Conv1d over the first A_DIM entries of row 4.
    y4 = jnp.dot(r4_ref[...].astype(bf16), t3_ref[...],
                 preferred_element_type=jnp.float32) + bc3_ref[...]
    s4 = jnp.maximum(y4, 0.0)                                            # [TB,384]

    # linear3 (2048->128): segmented matmuls against the pre-permuted [1920,128]
    # weight; linear2 (no ReLU) is folded into the rank-1 term x5*w25 and b3.
    hid = (jnp.dot(s0.astype(bf16), w3_ref[0:128, :],     preferred_element_type=jnp.float32)
           + jnp.dot(s1.astype(bf16), w3_ref[128:256, :],   preferred_element_type=jnp.float32)
           + jnp.dot(s2.astype(bf16), w3_ref[256:896, :],   preferred_element_type=jnp.float32)
           + jnp.dot(s3.astype(bf16), w3_ref[896:1536, :],  preferred_element_type=jnp.float32)
           + jnp.dot(s4.astype(bf16), w3_ref[1536:1920, :], preferred_element_type=jnp.float32)
           + x5_ref[...] * w25_ref[...]
           + b3_ref[...])
    hid = jnp.maximum(hid, 0.0)                                          # [TB,128]

    # linear4 (128 -> A_DIM), output padded to 128 lanes for unmasked stores.
    o_ref[...] = (jnp.dot(hid.astype(bf16), w4_ref[...],
                          preferred_element_type=jnp.float32) + b4_ref[...])


# ----------------------------------------------------------------------------- wrapper
def _round_up(n, m):
    return ((n + m - 1) // m) * m


def actor_forward(x, p, *, block_b=1024):
    """x: [B, 6, 8] (or [B, 48]); p: dict of PyTorch-layout params.

    block_b: batch-tile size.  1024 keeps per-tile VMEM well under the v7x scoped
    default; on v6e/v5e (128 MiB VMEM) it can be raised to 4096-8192.
    """
    f32, bf16 = jnp.float32, jnp.bfloat16
    x = jnp.asarray(x, f32).reshape(-1, S0, S1)
    B = x.shape[0]

    # ---- batch tiling -------------------------------------------------------
    nblk = max(1, -(-B // block_b))               # cdiv
    TB = _round_up(-(-B // nblk), 8)
    Bp = nblk * TB

    def pad_b(a):
        return jnp.pad(a, ((0, Bp - B), (0, 0))) if Bp != B else a

    x0 = pad_b(x[:, 0, S1 - 1:S1])                 # [Bp,1]
    x1 = pad_b(x[:, 1, S1 - 1:S1])
    x5 = pad_b(x[:, 5, S1 - 1:S1])
    r2 = pad_b(x[:, 2, :])                         # [Bp,8]
    r3 = pad_b(x[:, 3, :])
    r4 = pad_b(x[:, 4, :A_DIM])                    # [Bp,6]

    # ---- parameter re-layout (plain-JAX glue) -------------------------------
    w0 = p["w0"].T.astype(f32)                     # [1,128]
    w1 = p["w1"].T.astype(f32)
    b0 = p["b0"].reshape(1, HID).astype(f32)
    b1 = p["b1"].reshape(1, HID).astype(f32)

    wc2 = p["wc"][:, 0, :].astype(f32)             # [128,4]
    bc = p["bc"].astype(f32)

    def toeplitz(width):                           # Conv1d(1,128,4) -> [width, t_out*128]
        t_out = width - CONV_K + 1
        t = jnp.zeros((width, t_out * HID), f32)
        for i in range(t_out):
            t = t.at[i:i + CONV_K, i * HID:(i + 1) * HID].set(wc2.T)
        return t

    t5 = toeplitz(S1).astype(bf16)                                  # [8, 640]
    t3 = toeplitz(A_DIM).astype(bf16)                               # [6, 384]
    bc5 = jnp.tile(bc, T5_OUT).reshape(1, T5_OUT * HID)             # [1, 640]
    bc3 = jnp.tile(bc, T3_OUT).reshape(1, T3_OUT * HID)             # [1, 384]

    # linear3 weight: transpose, permute conv segments channel-major -> time-major
    # (to match the Toeplitz/time-major conv flatten), fold linear2 into it.
    w3t = p["w3"].T.astype(f32)                                     # [2048, 128]

    def tm(seg, t_out):                                             # ch-major -> time-major
        return seg.reshape(HID, t_out, HID).transpose(1, 0, 2).reshape(t_out * HID, HID)

    w3r = jnp.concatenate(
        [w3t[0:128], w3t[128:256],
         tm(w3t[256:896], T5_OUT), tm(w3t[896:1536], T5_OUT),
         tm(w3t[1536:1920], T3_OUT)], axis=0).astype(bf16)          # [1920, 128]
    w3_s5 = w3t[1920:2048]                                          # [128, 128]
    w25 = (p["w2"].T.astype(f32) @ w3_s5)                           # [1, 128]
    b3 = (p["b3"].astype(f32) + p["b2"].astype(f32) @ w3_s5).reshape(1, HID)

    w4 = jnp.zeros((HID, HID), f32).at[:, :A_DIM].set(p["w4"].T).astype(bf16)
    b4 = jnp.zeros((1, HID), f32).at[0, :A_DIM].set(p["b4"])

    # ---- pallas_call --------------------------------------------------------
    args = (x0, x1, x5, r2, r3, r4,
            w0, b0, w1, b1, w25,
            t5, bc5, t3, bc3,
            w3r, b3, w4, b4)

    def row_spec(w):
        return pl.BlockSpec((TB, w), lambda i: (i, 0))

    def const_spec(shape):
        return pl.BlockSpec(shape, lambda i: (0,) * len(shape))

    in_specs = ([row_spec(1), row_spec(1), row_spec(1),
                 row_spec(S1), row_spec(S1), row_spec(A_DIM)]
                + [const_spec(a.shape) for a in args[6:]])

    flops = 2 * B * (2 * S1 * T5_OUT * HID + A_DIM * T3_OUT * HID
                     + 1920 * HID + HID * HID)
    bytes_accessed = int(sum(a.size * a.dtype.itemsize for a in args) + Bp * HID * 4)

    out = pl.pallas_call(
        actor_kernel,
        out_shape=jax.ShapeDtypeStruct((Bp, HID), f32),
        grid=(nblk,),
        in_specs=in_specs,
        out_specs=pl.BlockSpec((TB, HID), lambda i: (i, 0)),
        compiler_params=pltpu.CompilerParams(
            dimension_semantics=("parallel",),
            vmem_limit_bytes=40 * 1024 * 1024),
        cost_estimate=pl.CostEstimate(flops=int(flops), transcendentals=0,
                                      bytes_accessed=bytes_accessed),
    )(*args)
    return out[:B, :A_DIM]


# ----------------------------------------------------------------------------- reference
def reference_forward(x, p):
    x = jnp.asarray(x, jnp.float32).reshape(-1, S0, S1)
    last = x[:, :, -1]
    s0 = jax.nn.relu(last[:, 0:1] @ p["w0"].T + p["b0"])
    s1 = jax.nn.relu(last[:, 1:2] @ p["w1"].T + p["b1"])
    s5 = last[:, 5:6] @ p["w2"].T + p["b2"]

    def conv(row):                        # PyTorch Conv1d(1,128,4): channel-major flatten
        t_out = row.shape[1] - CONV_K + 1
        y = jnp.stack([row[:, t:t + CONV_K] @ p["wc"][:, 0, :].T for t in range(t_out)],
                      axis=2)             # [B, 128, t_out]
        y = jax.nn.relu(y + p["bc"][None, :, None])
        return y.reshape(row.shape[0], -1)

    s2 = conv(x[:, 2, :])
    s3 = conv(x[:, 3, :])
    s4 = conv(x[:, 4, :A_DIM])
    h = jnp.concatenate([s0, s1, s2, s3, s4, s5], axis=1)          # [B, 2048]
    hid = jax.nn.relu(h @ p["w3"].T + p["b3"])
    return hid @ p["w4"].T + p["b4"]


# ----------------------------------------------------------------------------- params
def init_params(key):
    def u(k, shape, fan_in):
        b = 1.0 / math.sqrt(fan_in)
        return jax.random.uniform(k, shape, jnp.float32, -b, b)

    ks = jax.random.split(key, 12)
    return {
        "w0": u(ks[0], (HID, 1), 1),       "b0": u(ks[1], (HID,), 1),
        "w1": u(ks[2], (HID, 1), 1),       "b1": u(ks[3], (HID,), 1),
        "w2": u(ks[4], (HID, 1), 1),       "b2": u(ks[5], (HID,), 1),
        "wc": u(ks[6], (HID, 1, CONV_K), CONV_K), "bc": u(ks[7], (HID,), CONV_K),
        "w3": u(ks[8], (HID, 2048), 2048), "b3": u(ks[9], (HID,), 2048),
        "w4": u(ks[10], (A_DIM, HID), HID), "b4": u(ks[11], (A_DIM,), HID),
    }


if __name__ == "__main__":
    key = jax.random.PRNGKey(0)
    kx, kp = jax.random.split(key)
    B = 2
    x = jax.random.normal(kx, (B, S0, S1), jnp.float32)
    params = init_params(kp)

    out = jax.block_until_ready(actor_forward(x, params))
    ref = jax.block_until_ready(reference_forward(x, params))

    assert out.shape == (B, A_DIM), out.shape
    # bf16 MXU operands -> relaxed tolerance vs. the f32 reference.
    assert jnp.allclose(out, ref, atol=5e-2, rtol=5e-2), (out, ref)
    print("KERNEL_OK")
</pallas_src>

<mosaic_0001>
module attributes {stable_mosaic.version = 11 : i64} {
  func.func @actor_kernel(%arg0: i32, %arg1: memref<8x1xf32, #tpu.memory_space<vmem>>, %arg2: memref<8x1xf32, #tpu.memory_space<vmem>>, %arg3: memref<8x1xf32, #tpu.memory_space<vmem>>, %arg4: memref<8x8xf32, #tpu.memory_space<vmem>>, %arg5: memref<8x8xf32, #tpu.memory_space<vmem>>, %arg6: memref<8x6xf32, #tpu.memory_space<vmem>>, %arg7: memref<1x128xf32, #tpu.memory_space<vmem>>, %arg8: memref<1x128xf32, #tpu.memory_space<vmem>>, %arg9: memref<1x128xf32, #tpu.memory_space<vmem>>, %arg10: memref<1x128xf32, #tpu.memory_space<vmem>>, %arg11: memref<1x128xf32, #tpu.memory_space<vmem>>, %arg12: memref<8x640xbf16, #tpu.memory_space<vmem>>, %arg13: memref<1x640xf32, #tpu.memory_space<vmem>>, %arg14: memref<6x384xbf16, #tpu.memory_space<vmem>>, %arg15: memref<1x384xf32, #tpu.memory_space<vmem>>, %arg16: memref<1920x128xbf16, #tpu.memory_space<vmem>>, %arg17: memref<1x128xf32, #tpu.memory_space<vmem>>, %arg18: memref<128x128xbf16, #tpu.memory_space<vmem>>, %arg19: memref<1x128xf32, #tpu.memory_space<vmem>>, %arg20: memref<8x128xf32, #tpu.memory_space<vmem>>) attributes {dimension_semantics = [#tpu.dimension_semantics<parallel>], iteration_bounds = array<i64: 1>, scalar_prefetch = 0 : i64, scratch_operands = 0 : i64, tpu.core_type = #tpu.core_type<tc>, window_params = [{transform_indices = @transform_0, window_bounds = array<i64: 8, 1>}, {transform_indices = @transform_1, window_bounds = array<i64: 8, 1>}, {transform_indices = @transform_2, window_bounds = array<i64: 8, 1>}, {transform_indices = @transform_3, window_bounds = array<i64: 8, 8>}, {transform_indices = @transform_4, window_bounds = array<i64: 8, 8>}, {transform_indices = @transform_5, window_bounds = array<i64: 8, 6>}, {pipeline_mode = #tpu.pipeline_mode<synchronous>, transform_indices = @transform_6, window_bounds = array<i64: 1, 128>}, {pipeline_mode = #tpu.pipeline_mode<synchronous>, transform_indices = @transform_7, window_bounds = array<i64: 1, 128>}, {pipeline_mode = #tpu.pipeline_mode<synchronous>, transform_indices = @transform_8, window_bounds = array<i64: 1, 128>}, {pipeline_mode = #tpu.pipeline_mode<synchronous>, transform_indices = @transform_9, window_bounds = array<i64: 1, 128>}, {pipeline_mode = #tpu.pipeline_mode<synchronous>, transform_indices = @transform_10, window_bounds = array<i64: 1, 128>}, {pipeline_mode = #tpu.pipeline_mode<synchronous>, transform_indices = @transform_11, window_bounds = array<i64: 8, 640>}, {pipeline_mode = #tpu.pipeline_mode<synchronous>, transform_indices = @transform_12, window_bounds = array<i64: 1, 640>}, {pipeline_mode = #tpu.pipeline_mode<synchronous>, transform_indices = @transform_13, window_bounds = array<i64: 6, 384>}, {pipeline_mode = #tpu.pipeline_mode<synchronous>, transform_indices = @transform_14, window_bounds = array<i64: 1, 384>}, {pipeline_mode = #tpu.pipeline_mode<synchronous>, transform_indices = @transform_15, window_bounds = array<i64: 1920, 128>}, {pipeline_mode = #tpu.pipeline_mode<synchronous>, transform_indices = @transform_16, window_bounds = array<i64: 1, 128>}, {pipeline_mode = #tpu.pipeline_mode<synchronous>, transform_indices = @transform_17, window_bounds = array<i64: 128, 128>}, {pipeline_mode = #tpu.pipeline_mode<synchronous>, transform_indices = @transform_18, window_bounds = array<i64: 1, 128>}, {transform_indices = @transform_19, window_bounds = array<i64: 8, 128>}]} {
    %c0 = arith.constant 0 : index
    %c0_0 = arith.constant 0 : index
    %0 = vector.load %arg1[%c0, %c0_0] : memref<8x1xf32, #tpu.memory_space<vmem>>, vector<8x1xf32>
    %c0_1 = arith.constant 0 : index
    %c0_2 = arith.constant 0 : index
    %1 = vector.load %arg7[%c0_1, %c0_2] : memref<1x128xf32, #tpu.memory_space<vmem>>, vector<1x128xf32>
    %2 = vector.broadcast %0 : vector<8x1xf32> to vector<8x128xf32>
    %3 = vector.broadcast %1 : vector<1x128xf32> to vector<8x128xf32>
    %4 = arith.mulf %2, %3 : vector<8x128xf32>
    %c0_3 = arith.constant 0 : index
    %c0_4 = arith.constant 0 : index
    %5 = vector.load %arg8[%c0_3, %c0_4] : memref<1x128xf32, #tpu.memory_space<vmem>>, vector<1x128xf32>
    %6 = vector.broadcast %5 : vector<1x128xf32> to vector<8x128xf32>
    %7 = arith.addf %4, %6 : vector<8x128xf32>
    %cst = arith.constant 0.000000e+00 : f32
    %8 = vector.broadcast %cst : f32 to vector<8x128xf32>
    %9 = arith.maximumf %7, %8 : vector<8x128xf32>
    %c0_5 = arith.constant 0 : index
    %c0_6 = arith.constant 0 : index
    %10 = vector.load %arg2[%c0_5, %c0_6] : memref<8x1xf32, #tpu.memory_space<vmem>>, vector<8x1xf32>
    %c0_7 = arith.constant 0 : index
    %c0_8 = arith.constant 0 : index
    %11 = vector.load %arg9[%c0_7, %c0_8] : memref<1x128xf32, #tpu.memory_space<vmem>>, vector<1x128xf32>
    %12 = vector.broadcast %10 : vector<8x1xf32> to vector<8x128xf32>
    %13 = vector.broadcast %11 : vector<1x128xf32> to vector<8x128xf32>
    %14 = arith.mulf %12, %13 : vector<8x128xf32>
    %c0_9 = arith.constant 0 : index
    %c0_10 = arith.constant 0 : index
    %15 = vector.load %arg10[%c0_9, %c0_10] : memref<1x128xf32, #tpu.memory_space<vmem>>, vector<1x128xf32>
    %16 = vector.broadcast %15 : vector<1x128xf32> to vector<8x128xf32>
    %17 = arith.addf %14, %16 : vector<8x128xf32>
    %cst_11 = arith.constant 0.000000e+00 : f32
    %18 = vector.broadcast %cst_11 : f32 to vector<8x128xf32>
    %19 = arith.maximumf %17, %18 : vector<8x128xf32>
    %c0_12 = arith.constant 0 : index
    %c0_13 = arith.constant 0 : index
    %20 = vector.load %arg4[%c0_12, %c0_13] : memref<8x8xf32, #tpu.memory_space<vmem>>, vector<8x8xf32>
    %c0_14 = arith.constant 0 : index
    %c0_15 = arith.constant 0 : index
    %21 = vector.load %arg5[%c0_14, %c0_15] : memref<8x8xf32, #tpu.memory_space<vmem>>, vector<8x8xf32>
    %22 = tpu.concatenate %20, %21 in 0 : vector<8x8xf32>, vector<8x8xf32> -> vector<16x8xf32>
    %23 = arith.truncf %22 : vector<16x8xf32> to vector<16x8xbf16>
    %c0_16 = arith.constant 0 : index
    %c0_17 = arith.constant 0 : index
    %24 = vector.load %arg12[%c0_16, %c0_17] : memref<8x640xbf16, #tpu.memory_space<vmem>>, vector<8x640xbf16>
    %cst_18 = arith.constant dense<0.000000e+00> : vector<16x640xf32>
    %25 = tpu.matmul %23, %24, %cst_18 {dimension_numbers = #tpu.dot_dimension_numbers<[1], [0], [0], [1], [0, 0, 1, 1], [], []>} : vector<16x8xbf16>, vector<8x640xbf16>, vector<16x640xf32> -> vector<16x640xf32>
    %c0_19 = arith.constant 0 : index
    %c0_20 = arith.constant 0 : index
    %26 = vector.load %arg13[%c0_19, %c0_20] : memref<1x640xf32, #tpu.memory_space<vmem>>, vector<1x640xf32>
    %27 = vector.broadcast %26 : vector<1x640xf32> to vector<16x640xf32>
    %28 = arith.addf %25, %27 : vector<16x640xf32>
    %cst_21 = arith.constant 0.000000e+00 : f32
    %29 = vector.broadcast %cst_21 : f32 to vector<16x640xf32>
    %30 = arith.maximumf %28, %29 : vector<16x640xf32>
    %31 = vector.extract_strided_slice %30 {offsets = [0, 0], sizes = [8, 640], strides = [1, 1]} : vector<16x640xf32> to vector<8x640xf32>
    %32 = vector.extract_strided_slice %30 {offsets = [8, 0], sizes = [8, 640], strides = [1, 1]} : vector<16x640xf32> to vector<8x640xf32>
    %c0_22 = arith.constant 0 : index
    %c0_23 = arith.constant 0 : index
    %33 = vector.load %arg6[%c0_22, %c0_23] : memref<8x6xf32, #tpu.memory_space<vmem>>, vector<8x6xf32>
    %34 = arith.truncf %33 : vector<8x6xf32> to vector<8x6xbf16>
    %c0_24 = arith.constant 0 : index
    %c0_25 = arith.constant 0 : index
    %35 = vector.load %arg14[%c0_24, %c0_25] : memref<6x384xbf16, #tpu.memory_space<vmem>>, vector<6x384xbf16>
    %cst_26 = arith.constant dense<0.000000e+00> : vector<8x384xf32>
    %36 = tpu.matmul %34, %35, %cst_26 {dimension_numbers = #tpu.dot_dimension_numbers<[1], [0], [0], [1], [0, 0, 1, 1], [], []>} : vector<8x6xbf16>, vector<6x384xbf16>, vector<8x384xf32> -> vector<8x384xf32>
    %c0_27 = arith.constant 0 : index
    %c0_28 = arith.constant 0 : index
    %37 = vector.load %arg15[%c0_27, %c0_28] : memref<1x384xf32, #tpu.memory_space<vmem>>, vector<1x384xf32>
    %38 = vector.broadcast %37 : vector<1x384xf32> to vector<8x384xf32>
    %39 = arith.addf %36, %38 : vector<8x384xf32>
    %cst_29 = arith.constant 0.000000e+00 : f32
    %40 = vector.broadcast %cst_29 : f32 to vector<8x384xf32>
    %41 = arith.maximumf %39, %40 : vector<8x384xf32>
    %42 = arith.truncf %9 : vector<8x128xf32> to vector<8x128xbf16>
    %c0_30 = arith.constant 0 : index
    %c0_31 = arith.constant 0 : index
    %43 = vector.load %arg16[%c0_30, %c0_31] : memref<1920x128xbf16, #tpu.memory_space<vmem>>, vector<128x128xbf16>
    %cst_32 = arith.constant dense<0.000000e+00> : vector<8x128xf32>
    %44 = tpu.matmul %42, %43, %cst_32 {dimension_numbers = #tpu.dot_dimension_numbers<[1], [0], [0], [1], [0, 0, 1, 1], [], []>} : vector<8x128xbf16>, vector<128x128xbf16>, vector<8x128xf32> -> vector<8x128xf32>
    %45 = arith.truncf %19 : vector<8x128xf32> to vector<8x128xbf16>
    %c128 = arith.constant 128 : index
    %c0_33 = arith.constant 0 : index
    %46 = vector.load %arg16[%c128, %c0_33] : memref<1920x128xbf16, #tpu.memory_space<vmem>>, vector<128x128xbf16>
    %cst_34 = arith.constant dense<0.000000e+00> : vector<8x128xf32>
    %47 = tpu.matmul %45, %46, %cst_34 {dimension_numbers = #tpu.dot_dimension_numbers<[1], [0], [0], [1], [0, 0, 1, 1], [], []>} : vector<8x128xbf16>, vector<128x128xbf16>, vector<8x128xf32> -> vector<8x128xf32>
    %48 = arith.addf %44, %47 : vector<8x128xf32>
    %49 = arith.truncf %31 : vector<8x640xf32> to vector<8x640xbf16>
    %c256 = arith.constant 256 : index
    %c0_35 = arith.constant 0 : index
    %50 = vector.load %arg16[%c256, %c0_35] : memref<1920x128xbf16, #tpu.memory_space<vmem>>, vector<640x128xbf16>
    %cst_36 = arith.constant dense<0.000000e+00> : vector<8x128xf32>
    %51 = tpu.matmul %49, %50, %cst_36 {dimension_numbers = #tpu.dot_dimension_numbers<[1], [0], [0], [1], [0, 0, 1, 1], [], []>} : vector<8x640xbf16>, vector<640x128xbf16>, vector<8x128xf32> -> vector<8x128xf32>
    %52 = arith.addf %48, %51 : vector<8x128xf32>
    %53 = arith.truncf %32 : vector<8x640xf32> to vector<8x640xbf16>
    %c896 = arith.constant 896 : index
    %c0_37 = arith.constant 0 : index
    %54 = vector.load %arg16[%c896, %c0_37] : memref<1920x128xbf16, #tpu.memory_space<vmem>>, vector<640x128xbf16>
    %cst_38 = arith.constant dense<0.000000e+00> : vector<8x128xf32>
    %55 = tpu.matmul %53, %54, %cst_38 {dimension_numbers = #tpu.dot_dimension_numbers<[1], [0], [0], [1], [0, 0, 1, 1], [], []>} : vector<8x640xbf16>, vector<640x128xbf16>, vector<8x128xf32> -> vector<8x128xf32>
    %56 = arith.addf %52, %55 : vector<8x128xf32>
    %57 = arith.truncf %41 : vector<8x384xf32> to vector<8x384xbf16>
    %c1536 = arith.constant 1536 : index
    %c0_39 = arith.constant 0 : index
    %58 = vector.load %arg16[%c1536, %c0_39] : memref<1920x128xbf16, #tpu.memory_space<vmem>>, vector<384x128xbf16>
    %cst_40 = arith.constant dense<0.000000e+00> : vector<8x128xf32>
    %59 = tpu.matmul %57, %58, %cst_40 {dimension_numbers = #tpu.dot_dimension_numbers<[1], [0], [0], [1], [0, 0, 1, 1], [], []>} : vector<8x384xbf16>, vector<384x128xbf16>, vector<8x128xf32> -> vector<8x128xf32>
    %60 = arith.addf %56, %59 : vector<8x128xf32>
    %c0_41 = arith.constant 0 : index
    %c0_42 = arith.constant 0 : index
    %61 = vector.load %arg3[%c0_41, %c0_42] : memref<8x1xf32, #tpu.memory_space<vmem>>, vector<8x1xf32>
    %c0_43 = arith.constant 0 : index
    %c0_44 = arith.constant 0 : index
    %62 = vector.load %arg11[%c0_43, %c0_44] : memref<1x128xf32, #tpu.memory_space<vmem>>, vector<1x128xf32>
    %63 = vector.broadcast %61 : vector<8x1xf32> to vector<8x128xf32>
    %64 = vector.broadcast %62 : vector<1x128xf32> to vector<8x128xf32>
    %65 = arith.mulf %63, %64 : vector<8x128xf32>
    %66 = arith.addf %60, %65 : vector<8x128xf32>
    %c0_45 = arith.constant 0 : index
    %c0_46 = arith.constant 0 : index
    %67 = vector.load %arg17[%c0_45, %c0_46] : memref<1x128xf32, #tpu.memory_space<vmem>>, vector<1x128xf32>
    %68 = vector.broadcast %67 : vector<1x128xf32> to vector<8x128xf32>
    %69 = arith.addf %66, %68 : vector<8x128xf32>
    %cst_47 = arith.constant 0.000000e+00 : f32
    %70 = vector.broadcast %cst_47 : f32 to vector<8x128xf32>
    %71 = arith.maximumf %69, %70 : vector<8x128xf32>
    %72 = arith.truncf %71 : vector<8x128xf32> to vector<8x128xbf16>
    %c0_48 = arith.constant 0 : index
    %c0_49 = arith.constant 0 : index
    %73 = vector.load %arg18[%c0_48, %c0_49] : memref<128x128xbf16, #tpu.memory_space<vmem>>, vector<128x128xbf16>
    %cst_50 = arith.constant dense<0.000000e+00> : vector<8x128xf32>
    %74 = tpu.matmul %72, %73, %cst_50 {dimension_numbers = #tpu.dot_dimension_numbers<[1], [0], [0], [1], [0, 0, 1, 1], [], []>} : vector<8x128xbf16>, vector<128x128xbf16>, vector<8x128xf32> -> vector<8x128xf32>
    %c0_51 = arith.constant 0 : index
    %c0_52 = arith.constant 0 : index
    %75 = vector.load %arg19[%c0_51, %c0_52] : memref<1x128xf32, #tpu.memory_space<vmem>>, vector<1x128xf32>
    %76 = vector.broadcast %75 : vector<1x128xf32> to vector<8x128xf32>
    %77 = arith.addf %74, %76 : vector<8x128xf32>
    %c0_53 = arith.constant 0 : index
    %c0_54 = arith.constant 0 : index
    %78 = vector.load %arg20[%c0_53, %c0_54] : memref<8x128xf32, #tpu.memory_space<vmem>>, vector<8x128xf32>
    tpu.vector_store %arg20[%c0_53, %c0_54], %77 {strides = array<i32>} : memref<8x128xf32, #tpu.memory_space<vmem>>, vector<8x128xf32>,
    return
  }
  func.func @transform_0(%arg0: i32) -> (i32, i32) {
    %c0_i32 = arith.constant 0 : i32
    %c0_i32_0 = arith.constant 0 : i32
    return %arg0, %c0_i32 : i32, i32
  }
  func.func @transform_1(%arg0: i32) -> (i32, i32) {
    %c0_i32 = arith.constant 0 : i32
    %c0_i32_0 = arith.constant 0 : i32
    return %arg0, %c0_i32 : i32, i32
  }
  func.func @transform_2(%arg0: i32) -> (i32, i32) {
    %c0_i32 = arith.constant 0 : i32
    %c0_i32_0 = arith.constant 0 : i32
    return %arg0, %c0_i32 : i32, i32
  }
  func.func @transform_3(%arg0: i32) -> (i32, i32) {
    %c0_i32 = arith.constant 0 : i32
    %c0_i32_0 = arith.constant 0 : i32
    return %arg0, %c0_i32 : i32, i32
  }
  func.func @transform_4(%arg0: i32) -> (i32, i32) {
    %c0_i32 = arith.constant 0 : i32
    %c0_i32_0 = arith.constant 0 : i32
    return %arg0, %c0_i32 : i32, i32
  }
  func.func @transform_5(%arg0: i32) -> (i32, i32) {
    %c0_i32 = arith.constant 0 : i32
    %c0_i32_0 = arith.constant 0 : i32
    return %arg0, %c0_i32 : i32, i32
  }
  func.func @transform_6(%arg0: i32) -> (i32, i32) {
    %c0_i32 = arith.constant 0 : i32
    %c0_i32_0 = arith.constant 0 : i32
    %c0_i32_1 = arith.constant 0 : i32
    return %c0_i32, %c0_i32_0 : i32, i32
  }
  func.func @transform_7(%arg0: i32) -> (i32, i32) {
    %c0_i32 = arith.constant 0 : i32
    %c0_i32_0 = arith.constant 0 : i32
    %c0_i32_1 = arith.constant 0 : i32
    return %c0_i32, %c0_i32_0 : i32, i32
  }
  func.func @transform_8(%arg0: i32) -> (i32, i32) {
    %c0_i32 = arith.constant 0 : i32
    %c0_i32_0 = arith.constant 0 : i32
    %c0_i32_1 = arith.constant 0 : i32
    return %c0_i32, %c0_i32_0 : i32, i32
  }
  func.func @transform_9(%arg0: i32) -> (i32, i32) {
    %c0_i32 = arith.constant 0 : i32
    %c0_i32_0 = arith.constant 0 : i32
    %c0_i32_1 = arith.constant 0 : i32
    return %c0_i32, %c0_i32_0 : i32, i32
  }
  func.func @transform_10(%arg0: i32) -> (i32, i32) {
    %c0_i32 = arith.constant 0 : i32
    %c0_i32_0 = arith.constant 0 : i32
    %c0_i32_1 = arith.constant 0 : i32
    return %c0_i32, %c0_i32_0 : i32, i32
  }
  func.func @transform_11(%arg0: i32) -> (i32, i32) {
    %c0_i32 = arith.constant 0 : i32
    %c0_i32_0 = arith.constant 0 : i32
    %c0_i32_1 = arith.constant 0 : i32
    return %c0_i32, %c0_i32_0 : i32, i32
  }
  func.func @transform_12(%arg0: i32) -> (i32, i32) {
    %c0_i32 = arith.constant 0 : i32
    %c0_i32_0 = arith.constant 0 : i32
    %c0_i32_1 = arith.constant 0 : i32
    return %c0_i32, %c0_i32_0 : i32, i32
  }
  func.func @transform_13(%arg0: i32) -> (i32, i32) {
    %c0_i32 = arith.constant 0 : i32
    %c0_i32_0 = arith.constant 0 : i32
    %c0_i32_1 = arith.constant 0 : i32
    return %c0_i32, %c0_i32_0 : i32, i32
  }
  func.func @transform_14(%arg0: i32) -> (i32, i32) {
    %c0_i32 = arith.constant 0 : i32
    %c0_i32_0 = arith.constant 0 : i32
    %c0_i32_1 = arith.constant 0 : i32
    return %c0_i32, %c0_i32_0 : i32, i32
  }
  func.func @transform_15(%arg0: i32) -> (i32, i32) {
    %c0_i32 = arith.constant 0 : i32
    %c0_i32_0 = arith.constant 0 : i32
    %c0_i32_1 = arith.constant 0 : i32
    return %c0_i32, %c0_i32_0 : i32, i32
  }
  func.func @transform_16(%arg0: i32) -> (i32, i32) {
    %c0_i32 = arith.constant 0 : i32
    %c0_i32_0 = arith.constant 0 : i32
    %c0_i32_1 = arith.constant 0 : i32
    return %c0_i32, %c0_i32_0 : i32, i32
  }
  func.func @transform_17(%arg0: i32) -> (i32, i32) {
    %c0_i32 = arith.constant 0 : i32
    %c0_i32_0 = arith.constant 0 : i32
    %c0_i32_1 = arith.constant 0 : i32
    return %c0_i32, %c0_i32_0 : i32, i32
  }
  func.func @transform_18(%arg0: i32) -> (i32, i32) {
    %c0_i32 = arith.constant 0 : i32
    %c0_i32_0 = arith.constant 0 : i32
    %c0_i32_1 = arith.constant 0 : i32
    return %c0_i32, %c0_i32_0 : i32, i32
  }
  func.func @transform_19(%arg0: i32) -> (i32, i32) {
    %c0_i32 = arith.constant 0 : i32
    %c0_i32_0 = arith.constant 0 : i32
    return %arg0, %c0_i32 : i32, i32
  }
}

</mosaic_0001>

<llo_original>
// kernel: tpu_custom_call.1
$region0: #{tpu_custom_call.1}
  #allocation0 [shape = 'u32[]', space=smem, size = 0x4, offset = 0x4, fixed_abs, tag = 'smem constant byte address 0x4 - core index']
  #allocation1 [shape = 'u32[144,128]{1,0:T(1,128)}', space=vmem, size = 0x12000, scoped, tag = 'internal scratch']
  %s0 = inlined_call_operand.vmem [shape: f32[8,1], index: 0, kind: input, shape index: {}]
  %s1 = inlined_call_operand.vmem [shape: f32[8,1], index: 1, kind: input, shape index: {}]
  %s2 = inlined_call_operand.vmem [shape: f32[8,1], index: 2, kind: input, shape index: {}]
  %s3 = inlined_call_operand.hbm [shape: f32[8,8], index: 3, kind: input, shape index: {}]
  %s4 = inlined_call_operand.hbm [shape: f32[8,8], index: 4, kind: input, shape index: {}]
  %s5 = inlined_call_operand.hbm [shape: f32[8,6], index: 5, kind: input, shape index: {}]
  %s6 = inlined_call_operand.vmem [shape: f32[1,128], index: 6, kind: input, shape index: {}]
  %s7 = inlined_call_operand.vmem [shape: f32[1,128], index: 7, kind: input, shape index: {}]
  %s8 = inlined_call_operand.hbm [shape: f32[1,128], index: 8, kind: input, shape index: {}]
  %s9 = inlined_call_operand.hbm [shape: f32[1,128], index: 9, kind: input, shape index: {}]
  %s10 = inlined_call_operand.hbm [shape: f32[1,128], index: 10, kind: input, shape index: {}]
  %s11 = inlined_call_operand.vmem [shape: bf16[8,640], index: 11, kind: input, shape index: {}]
  %s12 = inlined_call_operand.vmem [shape: f32[1,640], index: 12, kind: input, shape index: {}]
  %s13 = inlined_call_operand.hbm [shape: bf16[6,384], index: 13, kind: input, shape index: {}]
  %s14 = inlined_call_operand.hbm [shape: f32[1,384], index: 14, kind: input, shape index: {}]
  %s15 = inlined_call_operand.hbm [shape: bf16[1920,128], index: 15, kind: input, shape index: {}]
  %s16 = inlined_call_operand.hbm [shape: f32[1,128], index: 16, kind: input, shape index: {}]
  %s17 = inlined_call_operand.vmem [shape: bf16[128,128], index: 17, kind: input, shape index: {}]
  %s18 = inlined_call_operand.vmem [shape: f32[1,128], index: 18, kind: input, shape index: {}]
  %s19 = inlined_call_operand.hbm [shape: f32[8,128], index: 19, kind: output, shape index: {}]
  %s20 = sld [smem:[#allocation0]]
  $region126: #{tpu_custom_call.1} parent=0
    _
  %s22 = ssub.s32 1, %s20
  %s23 = scalar_select 0, %s22, %s20
  $region1: #{tpu_custom_call.1} parent=0
    #allocation2 [shape = 'u8[4096]{0}', space=vmem, size = 0x1000, scoped, tag = 'input window, operand 3, single buffered']
    #allocation3 [shape = 's32[1]{0}', space=sflag, size = 0x4, scoped, tag = 'scoped memory for tpu_custom_call.1']
    #allocation4 [shape = 's32[1]{0}', space=sflag, size = 0x4, scoped, tag = 'scoped memory for tpu_custom_call.1']
    #allocation5 [shape = 'u8[4096]{0}', space=vmem, size = 0x1000, scoped, tag = 'input window, operand 4, single buffered']
    #allocation6 [shape = 's32[1]{0}', space=sflag, size = 0x4, scoped, tag = 'scoped memory for tpu_custom_call.1']
    #allocation7 [shape = 'u8[4096]{0}', space=vmem, size = 0x1000, scoped, tag = 'input window, operand 5, single buffered']
    #allocation8 [shape = 'u8[512]{0}', space=vmem, size = 0x400, scoped, tag = 'input window, operand 8, single buffered']
    #allocation9 [shape = 's32[1]{0}', space=sflag, size = 0x4, scoped, tag = 'scoped memory for tpu_custom_call.1']
    #allocation10 [shape = 'u8[512]{0}', space=vmem, size = 0x400, scoped, tag = 'input window, operand 9, single buffered']
    #allocation11 [shape = 'u8[512]{0}', space=vmem, size = 0x400, scoped, tag = 'input window, operand 10, single buffered']
    #allocation12 [shape = 's32[1]{0}', space=sflag, size = 0x4, scoped, tag = 'scoped memory for tpu_custom_call.1']
    #allocation13 [shape = 'u8[6144]{0}', space=vmem, size = 0x1800, scoped, tag = 'input window, operand 13, single buffered']
    #allocation14 [shape = 'u8[1536]{0}', space=vmem, size = 0x800, scoped, tag = 'input window, operand 14, single buffered']
    #allocation15 [shape = 's32[1]{0}', space=sflag, size = 0x4, scoped, tag = 'scoped memory for tpu_custom_call.1']
    #allocation16 [shape = 'u8[491520]{0}', space=vmem, size = 0x78000, scoped, tag = 'input window, operand 15, single buffered']
    #allocation17 [shape = 'u8[512]{0}', space=vmem, size = 0x400, scoped, tag = 'input window, operand 16, single buffered']
    #allocation18 [shape = 's32[1]{0}', space=sflag, size = 0x4, scoped, tag = 'scoped memory for tpu_custom_call.1']
    #allocation19 [shape = 'u8[4096]{0}', space=vmem, size = 0x1000, scoped, tag = 'output window, operand 0, single buffered']
    %24 = vsyncpa [#allocation3], 0
    %25 = vsyncpa [#allocation6], 0
    %26 = vsyncpa [#allocation9], 0
    %27 = vsyncpa [#allocation12], 0
    %28 = vsyncpa [#allocation15], 0
    %29 = vsyncpa [#allocation18], 0
    %30 = vsyncpa [#allocation4], 0
    // Predicated region
    $region2: #{tpu_custom_call.1} parent=1 // pred_check
      _
    $region3: #{tpu_custom_call.1} parent=1 // pred_check_branch
      %32 = sbr.rel (0) target = $region5
    $region4: #{tpu_custom_call.1} parent=1 // pred_region
      _
    $region5: #{tpu_custom_call.1} parent=1 // pred_fallthru
      _
    // Predicated region
    $region6: #{tpu_custom_call.1} parent=1 // pred_check
      _
    $region7: #{tpu_custom_call.1} parent=1 // pred_check_branch
      %34 = sbr.rel (0) target = $region9
    $region8: #{tpu_custom_call.1} parent=1 // pred_region
      _
    $region9: #{tpu_custom_call.1} parent=1 // pred_fallthru
      _
    // Predicated region
    $region10: #{tpu_custom_call.1} parent=1 // pred_check
      _
    $region11: #{tpu_custom_call.1} parent=1 // pred_check_branch
      %36 = sbr.rel (0) target = $region13
    $region12: #{tpu_custom_call.1} parent=1 // pred_region
      _
    $region13: #{tpu_custom_call.1} parent=1 // pred_fallthru
      _
    // Predicated region
    $region14: #{tpu_custom_call.1} parent=1 // pred_check
      _
    $region15: #{tpu_custom_call.1} parent=1 // pred_check_branch
      %38 = sbr.rel (0) target = $region17
    $region16: #{tpu_custom_call.1} parent=1 // pred_region
      %s40 = ssub.s32 128, 128
      %41 = vsyncadd [#allocation3], %s40
      %s43 = sshll.u32 [#allocation2], 4
      %s44 = int_to_ptr.vmem [resolvable:$true] %s43
      %46 = dma.hbm_to_vmem [thread:$0]  %s3, 128, %s44, [#allocation3]
    $region17: #{tpu_custom_call.1} parent=1 // pred_fallthru
      _
    // Predicated region
    $region18: #{tpu_custom_call.1} parent=1 // pred_check
      _
    $region19: #{tpu_custom_call.1} parent=1 // pred_check_branch
      %48 = sbr.rel (0) target = $region21
    $region20: #{tpu_custom_call.1} parent=1 // pred_region
      %s50 = ssub.s32 128, 128
      %51 = vsyncadd [#allocation6], %s50
      %s53 = sshll.u32 [#allocation5], 4
      %s54 = int_to_ptr.vmem [resolvable:$true] %s53
      %56 = dma.hbm_to_vmem [thread:$0]  %s4, 128, %s54, [#allocation6]
    $region21: #{tpu_custom_call.1} parent=1 // pred_fallthru
      _
    // Predicated region
    $region22: #{tpu_custom_call.1} parent=1 // pred_check
      _
    $region23: #{tpu_custom_call.1} parent=1 // pred_check_branch
      %58 = sbr.rel (0) target = $region25
    $region24: #{tpu_custom_call.1} parent=1 // pred_region
      %s60 = ssub.s32 128, 128
      %61 = vsyncadd [#allocation6], %s60
      %s63 = sshll.u32 [#allocation7], 4
      %s64 = int_to_ptr.vmem [resolvable:$true] %s63
      %66 = dma.hbm_to_vmem [thread:$0]  %s5, 128, %s64, [#allocation6]
    $region25: #{tpu_custom_call.1} parent=1 // pred_fallthru
      _
    // Predicated region
    $region26: #{tpu_custom_call.1} parent=1 // pred_check
      _
    $region27: #{tpu_custom_call.1} parent=1 // pred_check_branch
      %68 = sbr.rel (0) target = $region29
    $region28: #{tpu_custom_call.1} parent=1 // pred_region
      _
    $region29: #{tpu_custom_call.1} parent=1 // pred_fallthru
      _
    // Predicated region
    $region30: #{tpu_custom_call.1} parent=1 // pred_check
      _
    $region31: #{tpu_custom_call.1} parent=1 // pred_check_branch
      %70 = sbr.rel (0) target = $region33
    $region32: #{tpu_custom_call.1} parent=1 // pred_region
      _
    $region33: #{tpu_custom_call.1} parent=1 // pred_fallthru
      _
    // Predicated region
    $region34: #{tpu_custom_call.1} parent=1 // pred_check
      _
    $region35: #{tpu_custom_call.1} parent=1 // pred_check_branch
      %72 = sbr.rel (0) target = $region37
    $region36: #{tpu_custom_call.1} parent=1 // pred_region
      %s74 = ssub.s32 16, 16
      %75 = vsyncadd [#allocation9], %s74
      %s77 = sshll.u32 [#allocation8], 4
      %s78 = int_to_ptr.vmem [resolvable:$true] %s77
      %80 = dma.hbm_to_vmem [thread:$0]  %s8, 16, %s78, [#allocation9]
    $region37: #{tpu_custom_call.1} parent=1 // pred_fallthru
      _
    // Predicated region
    $region38: #{tpu_custom_call.1} parent=1 // pred_check
      _
    $region39: #{tpu_custom_call.1} parent=1 // pred_check_branch
      %82 = sbr.rel (0) target = $region41
    $region40: #{tpu_custom_call.1} parent=1 // pred_region
      %s84 = ssub.s32 16, 16
      %85 = vsyncadd [#allocation9], %s84
      %s87 = sshll.u32 [#allocation10], 4
      %s88 = int_to_ptr.vmem [resolvable:$true] %s87
      %90 = dma.hbm_to_vmem [thread:$0]  %s9, 16, %s88, [#allocation9]
    $region41: #{tpu_custom_call.1} parent=1 // pred_fallthru
      _
    // Predicated region
    $region42: #{tpu_custom_call.1} parent=1 // pred_check
      _
    $region43: #{tpu_custom_call.1} parent=1 // pred_check_branch
      %92 = sbr.rel (0) target = $region45
    $region44: #{tpu_custom_call.1} parent=1 // pred_region
      %s94 = ssub.s32 16, 16
      %95 = vsyncadd [#allocation12], %s94
      %s97 = sshll.u32 [#allocation11], 4
      %s98 = int_to_ptr.vmem [resolvable:$true] %s97
      %100 = dma.hbm_to_vmem [thread:$0]  %s10, 16, %s98, [#allocation12]
    $region45: #{tpu_custom_call.1} parent=1 // pred_fallthru
      _
    // Predicated region
    $region46: #{tpu_custom_call.1} parent=1 // pred_check
      _
    $region47: #{tpu_custom_call.1} parent=1 // pred_check_branch
      %102 = sbr.rel (0) target = $region49
    $region48: #{tpu_custom_call.1} parent=1 // pred_region
      _
    $region49: #{tpu_custom_call.1} parent=1 // pred_fallthru
      _
    // Predicated region
    $region50: #{tpu_custom_call.1} parent=1 // pred_check
      _
    $region51: #{tpu_custom_call.1} parent=1 // pred_check_branch
      %104 = sbr.rel (0) target = $region53
    $region52: #{tpu_custom_call.1} parent=1 // pred_region
      _
    $region53: #{tpu_custom_call.1} parent=1 // pred_fallthru
      _
    // Predicated region
    $region54: #{tpu_custom_call.1} parent=1 // pred_check
      _
    $region55: #{tpu_custom_call.1} parent=1 // pred_check_branch
      %106 = sbr.rel (0) target = $region57
    $region56: #{tpu_custom_call.1} parent=1 // pred_region
      %s108 = ssub.s32 192, 192
      %109 = vsyncadd [#allocation12], %s108
      %s111 = sshll.u32 [#allocation13], 4
      %s112 = int_to_ptr.vmem [resolvable:$true] %s111
      %114 = dma.hbm_to_vmem [thread:$0]  %s13, 192, %s112, [#allocation12]
    $region57: #{tpu_custom_call.1} parent=1 // pred_fallthru
      _
    // Predicated region
    $region58: #{tpu_custom_call.1} parent=1 // pred_check
      _
    $region59: #{tpu_custom_call.1} parent=1 // pred_check_branch
      %116 = sbr.rel (0) target = $region61
    $region60: #{tpu_custom_call.1} parent=1 // pred_region
      %s118 = ssub.s32 48, 48
      %119 = vsyncadd [#allocation15], %s118
      %s121 = sshll.u32 [#allocation14], 4
      %s122 = int_to_ptr.vmem [resolvable:$true] %s121
      %124 = dma.hbm_to_vmem [thread:$0]  %s14, 48, %s122, [#allocation15]
    $region61: #{tpu_custom_call.1} parent=1 // pred_fallthru
      _
    // Predicated region
    $region62: #{tpu_custom_call.1} parent=1 // pred_check
      _
    $region63: #{tpu_custom_call.1} parent=1 // pred_check_branch
      %126 = sbr.rel (0) target = $region65
    $region64: #{tpu_custom_call.1} parent=1 // pred_region
      %s128 = ssub.s32 15360, 15360
      %129 = vsyncadd [#allocation15], %s128
      %s130 = sshll.u32 [#allocation16], 4
      %s131 = int_to_ptr.vmem [resolvable:$true] %s130
      %136 = dma.hbm_to_vmem [thread:$0]  %s15, 15360, %s131, [#allocation15], 64, 64, 4
    $region65: #{tpu_custom_call.1} parent=1 // pred_fallthru
      _
    // Predicated region
    $region66: #{tpu_custom_call.1} parent=1 // pred_check
      _
    $region67: #{tpu_custom_call.1} parent=1 // pred_check_branch
      %138 = sbr.rel (0) target = $region69
    $region68: #{tpu_custom_call.1} parent=1 // pred_region
      %s140 = ssub.s32 16, 16
      %141 = vsyncadd [#allocation18], %s140
      %s143 = sshll.u32 [#allocation17], 4
      %s144 = int_to_ptr.vmem [resolvable:$true] %s143
      %146 = dma.hbm_to_vmem [thread:$0]  %s16, 16, %s144, [#allocation18]
    $region69: #{tpu_custom_call.1} parent=1 // pred_fallthru
      _
    // Predicated region
    $region70: #{tpu_custom_call.1} parent=1 // pred_check
      _
    $region71: #{tpu_custom_call.1} parent=1 // pred_check_branch
      %148 = sbr.rel (0) target = $region73
    $region72: #{tpu_custom_call.1} parent=1 // pred_region
      _
    $region73: #{tpu_custom_call.1} parent=1 // pred_fallthru
      _
    // Predicated region
    $region74: #{tpu_custom_call.1} parent=1 // pred_check
      _
    $region75: #{tpu_custom_call.1} parent=1 // pred_check_branch
      %150 = sbr.rel (0) target = $region77
    $region76: #{tpu_custom_call.1} parent=1 // pred_region
      _
    $region77: #{tpu_custom_call.1} parent=1 // pred_fallthru
      _
    // Predicated region
    $region78: #{tpu_custom_call.1} parent=1 // pred_check
      _
    $region79: #{tpu_custom_call.1} parent=1 // pred_check_branch
      %152 = sbr.rel (0) target = $region81
    $region80: #{tpu_custom_call.1} parent=1 // pred_region
      %153 = dma.done [#allocation3], 128
    $region81: #{tpu_custom_call.1} parent=1 // pred_fallthru
      _
    // Predicated region
    $region82: #{tpu_custom_call.1} parent=1 // pred_check
      _
    $region83: #{tpu_custom_call.1} parent=1 // pred_check_branch
      %155 = sbr.rel (0) target = $region85
    $region84: #{tpu_custom_call.1} parent=1 // pred_region
      %156 = dma.done [#allocation6], 128
    $region85: #{tpu_custom_call.1} parent=1 // pred_fallthru
      _
    // Predicated region
    $region86: #{tpu_custom_call.1} parent=1 // pred_check
      _
    $region87: #{tpu_custom_call.1} parent=1 // pred_check_branch
      %158 = sbr.rel (0) target = $region89
    $region88: #{tpu_custom_call.1} parent=1 // pred_region
      %159 = dma.done [#allocation6], 128
    $region89: #{tpu_custom_call.1} parent=1 // pred_fallthru
      _
    // Predicated region
    $region90: #{tpu_custom_call.1} parent=1 // pred_check
      _
    $region91: #{tpu_custom_call.1} parent=1 // pred_check_branch
      %161 = sbr.rel (0) target = $region93
    $region92: #{tpu_custom_call.1} parent=1 // pred_region
      %162 = dma.done [#allocation9], 16
    $region93: #{tpu_custom_call.1} parent=1 // pred_fallthru
      _
    // Predicated region
    $region94: #{tpu_custom_call.1} parent=1 // pred_check
      _
    $region95: #{tpu_custom_call.1} parent=1 // pred_check_branch
      %164 = sbr.rel (0) target = $region97
    $region96: #{tpu_custom_call.1} parent=1 // pred_region
      %165 = dma.done [#allocation9], 16
    $region97: #{tpu_custom_call.1} parent=1 // pred_fallthru
      _
    // Predicated region
    $region98: #{tpu_custom_call.1} parent=1 // pred_check
      _
    $region99: #{tpu_custom_call.1} parent=1 // pred_check_branch
      %167 = sbr.rel (0) target = $region101
    $region100: #{tpu_custom_call.1} parent=1 // pred_region
      %168 = dma.done [#allocation12], 16
    $region101: #{tpu_custom_call.1} parent=1 // pred_fallthru
      _
    // Predicated region
    $region102: #{tpu_custom_call.1} parent=1 // pred_check
      _
    $region103: #{tpu_custom_call.1} parent=1 // pred_check_branch
      %170 = sbr.rel (0) target = $region105
    $region104: #{tpu_custom_call.1} parent=1 // pred_region
      %171 = dma.done [#allocation12], 192
    $region105: #{tpu_custom_call.1} parent=1 // pred_fallthru
      _
    // Predicated region
    $region106: #{tpu_custom_call.1} parent=1 // pred_check
      _
    $region107: #{tpu_custom_call.1} parent=1 // pred_check_branch
      %173 = sbr.rel (0) target = $region109
    $region108: #{tpu_custom_call.1} parent=1 // pred_region
      %174 = dma.done [#allocation15], 48
    $region109: #{tpu_custom_call.1} parent=1 // pred_fallthru
      _
    // Predicated region
    $region110: #{tpu_custom_call.1} parent=1 // pred_check
      _
    $region111: #{tpu_custom_call.1} parent=1 // pred_check_branch
      %176 = sbr.rel (0) target = $region113
    $region112: #{tpu_custom_call.1} parent=1 // pred_region
      %177 = dma.done [#allocation15], 15360
    $region113: #{tpu_custom_call.1} parent=1 // pred_fallthru
      _
    // Predicated region
    $region114: #{tpu_custom_call.1} parent=1 // pred_check
      _
    $region115: #{tpu_custom_call.1} parent=1 // pred_check_branch
      %179 = sbr.rel (0) target = $region117
    $region116: #{tpu_custom_call.1} parent=1 // pred_region
      %180 = dma.done [#allocation18], 16
    $region117: #{tpu_custom_call.1} parent=1 // pred_fallthru
      _
    %v182 = vld [vmem:[%s0] sm:$0xff]
    %v183 = vld [vmem:[%s6] sm:$0x1]
    %185 = vset.pattern.permute.xlu0 0
    %186 = vperm.xlu0 %185, %v182
    %v187 = vpop.permute.xlu0 %186
    %v190 = vlaneseq
    %v191 = vshrl.u32 %v190, 7
    %v192 = vsub.s32 0, %v191
    %v193 = vrot.slane %v183, %v192
    %v195 = vmul.f32 %v187, %v193
    %v196 = vld [vmem:[%s7] sm:$0x1]
    %v198 = vlaneseq
    %v199 = vshrl.u32 %v198, 7
    %v200 = vsub.s32 0, %v199
    %v201 = vrot.slane %v196, %v200
    %v203 = vadd.f32 %v195, %v201
    %v204 = vmax.f32 %v203, 0.0
    %v205 = vld [vmem:[%s1] sm:$0xff]
    %v206 = vld [vmem:[#allocation8] sm:$0x1]
    %208 = vset.pattern.permute.xlu0 0
    %209 = vperm.xlu0 %208, %v205
    %v210 = vpop.permute.xlu0 %209
    %v213 = vlaneseq
    %v214 = vshrl.u32 %v213, 7
    %v215 = vsub.s32 0, %v214
    %v216 = vrot.slane %v206, %v215
    %v218 = vmul.f32 %v210, %v216
    %v219 = vld [vmem:[#allocation10] sm:$0x1]
    %v221 = vlaneseq
    %v222 = vshrl.u32 %v221, 7
    %v223 = vsub.s32 0, %v222
    %v224 = vrot.slane %v219, %v223
    %v226 = vadd.f32 %v218, %v224
    %v227 = vmax.f32 %v226, 0.0
    %v228 = vld [vmem:[#allocation2] sm:$0xff]
    %v229 = vld [vmem:[#allocation5] sm:$0xff]
    %v230 = vpack.c.bf16 %v229, %v228
    %v231 = vld [vmem:[%s11] sm:$0xff]
    %v232 = vld [vmem:[%s11 + $0x8] sm:$0xff]
    %v233 = vld [vmem:[%s11 + $0x10] sm:$0xf]
    %v234 = vld [vmem:[%s12] sm:$0x1f]
    %v236 = vlaneseq
    %v237 = vshrl.u32 %v236, 7
    %v238 = vsub.s32 0, %v237
    %v239 = vrot.slane %v234, %v238
    %v240 = vlaneseq
    %v241 = vshrl.u32 %v240, 7
    %v242 = vsub.s32 1, %v241
    %v243 = vrot.slane %v234, %v242
    %v244 = vlaneseq
    %v245 = vshrl.u32 %v244, 7
    %v246 = vsub.s32 2, %v245
    %v247 = vrot.slane %v234, %v246
    %v248 = vlaneseq
    %v249 = vshrl.u32 %v248, 7
    %v250 = vsub.s32 3, %v249
    %v251 = vrot.slane %v234, %v250
    %v252 = vlaneseq
    %v253 = vshrl.u32 %v252, 7
    %v254 = vsub.s32 4, %v253
    %v255 = vrot.slane %v234, %v254
    %v264 = vunpack.c.l.b16 %v231
    %v265 = vunpack.c.h.b16 %v231
    %v266 = vunpack.c.l.b16 %v232
    %v267 = vunpack.c.h.b16 %v232
    %v268 = vunpack.c.l.b16 %v233
    %v269 = vpack.c.b16 %v264, %v264
    %v270 = vpack.c.b16 %v265, %v265
    %v271 = vpack.c.b16 %v266, %v266
    %v272 = vpack.c.b16 %v267, %v267
    %v273 = vpack.c.b16 %v268, %v268
    %vm274 = vcmask 64512
    %v276 = vsel %vm274, %v230, 0
    %vm278 = vcmask 1043456
    %v280 = vsel %vm278, %v269, 0
    %v283 = vsel %vm278, %v270, 0
    %v286 = vsel %vm278, %v271, 0
    %v289 = vsel %vm278, %v272, 0
    %v292 = vsel %vm278, %v273, 0
    %294 = vmatprep.subr.bf16.mxu0 %v283
    %295 = vmatpush1.bf16.msra.mxu0 %v280
    %296 = vmatprep.subr.bf16.mxu0 0
    %297 = vmatpush1.bf16.msra.mxu0 0
    %298 = vmatprep.subr.bf16.mxu0 0
    %299 = vmatpush1.bf16.msra.mxu0 0
    %300 = vmatprep.subr.bf16.mxu0 0
    %301 = vmatpush1.bf16.msra.mxu0 0
    %302 = vmatprep.subr.bf16.mxu0 0
    %303 = vmatpush1.bf16.msra.mxu0 0
    %304 = vmatprep.subr.bf16.mxu0 0
    %305 = vmatpush1.bf16.msra.mxu0 0
    %306 = vmatprep.subr.bf16.mxu0 0
    %307 = vmatpush1.bf16.msra.mxu0 0
    %308 = vmatprep.subr.bf16.mxu0 0
    %309 = vmatpush1.bf16.msra.mxu0 0
    %310 = vmatprep.subr.bf16.mxu0 0
    %311 = vmatpush1.bf16.msra.mxu0 0
    %312 = vmatprep.subr.bf16.mxu0 0
    %313 = vmatpush1.bf16.msra.mxu0 0
    %314 = vmatprep.subr.bf16.mxu0 0
    %315 = vmatpush1.bf16.msra.mxu0 0
    %316 = vmatprep.subr.bf16.mxu0 0
    %317 = vmatpush1.bf16.msra.mxu0 0
    %318 = vmatprep.subr.bf16.mxu0 0
    %319 = vmatpush1.bf16.msra.mxu0 0
    %320 = vmatprep.subr.bf16.mxu0 0
    %321 = vmatpush1.bf16.msra.mxu0 0
    %322 = vmatprep.subr.bf16.mxu0 0
    %323 = vmatpush1.bf16.msra.mxu0 0
    %324 = vmatprep.subr.bf16.mxu0 0
    %325 = vmatpush1.bf16.msra.mxu0 0
    %326 = vmatprep.mubr.bf16.mxu0 0
    %327 = vmatmul.mubr.bf16.gmra.mrb[0].mxu0 %v276
    %v328 = vpop.f32.mrb[0].mxu0
    %v329 = vadd.f32 %v239, %v328
    %v330 = vpop.f32.mrb[0].mxu0
    %v331 = vadd.f32 %v243, %v330
    %v332 = vpop.f32.mrb[0].mxu0
    %v333 = vadd.f32 %v239, %v332
    %v334 = vpop.f32.mrb[0].mxu0
    %v335 = vadd.f32 %v243, %v334
    %336 = vdwg.mxu0
    %337 = vmatprep.subr.bf16.mxu0 %v289
    %338 = vmatpush1.bf16.msra.mxu0 %v286
    %339 = vmatprep.subr.bf16.mxu0 0
    %340 = vmatpush1.bf16.msra.mxu0 0
    %341 = vmatprep.subr.bf16.mxu0 0
    %342 = vmatpush1.bf16.msra.mxu0 0
    %343 = vmatprep.subr.bf16.mxu0 0
    %344 = vmatpush1.bf16.msra.mxu0 0
    %345 = vmatprep.subr.bf16.mxu0 0
    %346 = vmatpush1.bf16.msra.mxu0 0
    %347 = vmatprep.subr.bf16.mxu0 0
    %348 = vmatpush1.bf16.msra.mxu0 0
    %349 = vmatprep.subr.bf16.mxu0 0
    %350 = vmatpush1.bf16.msra.mxu0 0
    %351 = vmatprep.subr.bf16.mxu0 0
    %352 = vmatpush1.bf16.msra.mxu0 0
    %353 = vmatprep.subr.bf16.mxu0 0
    %354 = vmatpush1.bf16.msra.mxu0 0
    %355 = vmatprep.subr.bf16.mxu0 0
    %356 = vmatpush1.bf16.msra.mxu0 0
    %357 = vmatprep.subr.bf16.mxu0 0
    %358 = vmatpush1.bf16.msra.mxu0 0
    %359 = vmatprep.subr.bf16.mxu0 0
    %360 = vmatpush1.bf16.msra.mxu0 0
    %361 = vmatprep.subr.bf16.mxu0 0
    %362 = vmatpush1.bf16.msra.mxu0 0
    %363 = vmatprep.subr.bf16.mxu0 0
    %364 = vmatpush1.bf16.msra.mxu0 0
    %365 = vmatprep.subr.bf16.mxu0 0
    %366 = vmatpush1.bf16.msra.mxu0 0
    %367 = vmatprep.subr.bf16.mxu0 0
    %368 = vmatpush1.bf16.msra.mxu0 0
    %369 = vmatprep.mubr.bf16.mxu0 0
    %370 = vmatmul.mubr.bf16.gmra.mrb[0].mxu0 %v276
    %v371 = vpop.f32.mrb[0].mxu0
    %v372 = vadd.f32 %v247, %v371
    %v373 = vpop.f32.mrb[0].mxu0
    %v374 = vadd.f32 %v251, %v373
    %v375 = vpop.f32.mrb[0].mxu0
    %v376 = vadd.f32 %v247, %v375
    %v377 = vpop.f32.mrb[0].mxu0
    %v378 = vadd.f32 %v251, %v377
    %379 = vdwg.mxu0
    %380 = vmatprep.subr.bf16.mxu0 0
    %381 = vmatpush1.bf16.msra.mxu0 %v292
    %382 = vmatprep.subr.bf16.mxu0 0
    %383 = vmatpush1.bf16.msra.mxu0 0
    %384 = vmatprep.subr.bf16.mxu0 0
    %385 = vmatpush1.bf16.msra.mxu0 0
    %386 = vmatprep.subr.bf16.mxu0 0
    %387 = vmatpush1.bf16.msra.mxu0 0
    %388 = vmatprep.subr.bf16.mxu0 0
    %389 = vmatpush1.bf16.msra.mxu0 0
    %390 = vmatprep.subr.bf16.mxu0 0
    %391 = vmatpush1.bf16.msra.mxu0 0
    %392 = vmatprep.subr.bf16.mxu0 0
    %393 = vmatpush1.bf16.msra.mxu0 0
    %394 = vmatprep.subr.bf16.mxu0 0
    %395 = vmatpush1.bf16.msra.mxu0 0
    %396 = vmatprep.subr.bf16.mxu0 0
    %397 = vmatpush1.bf16.msra.mxu0 0
    %398 = vmatprep.subr.bf16.mxu0 0
    %399 = vmatpush1.bf16.msra.mxu0 0
    %400 = vmatprep.subr.bf16.mxu0 0
    %401 = vmatpush1.bf16.msra.mxu0 0
    %402 = vmatprep.subr.bf16.mxu0 0
    %403 = vmatpush1.bf16.msra.mxu0 0
    %404 = vmatprep.subr.bf16.mxu0 0
    %405 = vmatpush1.bf16.msra.mxu0 0
    %406 = vmatprep.subr.bf16.mxu0 0
    %407 = vmatpush1.bf16.msra.mxu0 0
    %408 = vmatprep.subr.bf16.mxu0 0
    %409 = vmatpush1.bf16.msra.mxu0 0
    %410 = vmatprep.subr.bf16.mxu0 0
    %411 = vmatpush1.bf16.msra.mxu0 0
    %412 = vmatprep.mubr.bf16.mxu0 0
    %413 = vmatmul.mubr.bf16.gmra.mrb[0].mxu0 %v276
    %v414 = vpop.f32.mrb[0].mxu0
    %v415 = vadd.f32 %v255, %v414
    %v416 = vpop.f32.mrb[0].mxu0
    %v417 = vpop.f32.mrb[0].mxu0
    %v418 = vadd.f32 %v255, %v417
    %v419 = vpop.f32.mrb[0].mxu0
    %420 = vdwg.mxu0
    %v421 = vmax.f32 %v329, 0.0
    %v422 = vmax.f32 %v331, 0.0
    %v423 = vmax.f32 %v372, 0.0
    %v424 = vmax.f32 %v374, 0.0
    %v425 = vmax.f32 %v415, 0.0
    %v426 = vmax.f32 %v333, 0.0
    %v427 = vmax.f32 %v335, 0.0
    %v428 = vmax.f32 %v376, 0.0
    %v429 = vmax.f32 %v378, 0.0
    %v430 = vmax.f32 %v418, 0.0
    %v431 = vld [vmem:[#allocation7] sm:$0xff]
    %v432 = vpack.c.bf16 %v431, %v431
    %v433 = vld [vmem:[#allocation13] sm:$0x77]
    %v434 = vld [vmem:[#allocation13 + $0x8] sm:$0x7]
    %v435 = vld [vmem:[#allocation14] sm:$0x7]
    %v437 = vlaneseq
    %v438 = vshrl.u32 %v437, 7
    %v439 = vsub.s32 0, %v438
    %v440 = vrot.slane %v435, %v439
    %v441 = vlaneseq
    %v442 = vshrl.u32 %v441, 7
    %v443 = vsub.s32 1, %v442
    %v444 = vrot.slane %v435, %v443
    %v445 = vlaneseq
    %v446 = vshrl.u32 %v445, 7
    %v447 = vsub.s32 2, %v446
    %v448 = vrot.slane %v435, %v447
    %v454 = vunpack.c.l.b16 %v433
    %v455 = vunpack.c.h.b16 %v433
    %v456 = vunpack.c.l.b16 %v434
    %v457 = vpack.c.b16 %v454, %v454
    %v458 = vpack.c.b16 %v455, %v455
    %v459 = vpack.c.b16 %v456, %v456
    %vm460 = vcmask 48128
    %v462 = vsel %vm460, %v432, 0
    %vm464 = vcmask 1042432
    %v466 = vsel %vm464, %v457, 0
    %v469 = vsel %vm464, %v458, 0
    %v472 = vsel %vm464, %v459, 0
    %474 = vmatprep.subr.bf16.mxu0 %v469
    %475 = vmatpush1.bf16.msra.mxu0 %v466
    %476 = vmatprep.subr.bf16.mxu0 0
    %477 = vmatpush1.bf16.msra.mxu0 0
    %478 = vmatprep.subr.bf16.mxu0 0
    %479 = vmatpush1.bf16.msra.mxu0 0
    %480 = vmatprep.subr.bf16.mxu0 0
    %481 = vmatpush1.bf16.msra.mxu0 0
    %482 = vmatprep.subr.bf16.mxu0 0
    %483 = vmatpush1.bf16.msra.mxu0 0
    %484 = vmatprep.subr.bf16.mxu0 0
    %485 = vmatpush1.bf16.msra.mxu0 0
    %486 = vmatprep.subr.bf16.mxu0 0
    %487 = vmatpush1.bf16.msra.mxu0 0
    %488 = vmatprep.subr.bf16.mxu0 0
    %489 = vmatpush1.bf16.msra.mxu0 0
    %490 = vmatprep.subr.bf16.mxu0 0
    %491 = vmatpush1.bf16.msra.mxu0 0
    %492 = vmatprep.subr.bf16.mxu0 0
    %493 = vmatpush1.bf16.msra.mxu0 0
    %494 = vmatprep.subr.bf16.mxu0 0
    %495 = vmatpush1.bf16.msra.mxu0 0
    %496 = vmatprep.subr.bf16.mxu0 0
    %497 = vmatpush1.bf16.msra.mxu0 0
    %498 = vmatprep.subr.bf16.mxu0 0
    %499 = vmatpush1.bf16.msra.mxu0 0
    %500 = vmatprep.subr.bf16.mxu0 0
    %501 = vmatpush1.bf16.msra.mxu0 0
    %502 = vmatprep.subr.bf16.mxu0 0
    %503 = vmatpush1.bf16.msra.mxu0 0
    %504 = vmatprep.subr.bf16.mxu0 0
    %505 = vmatpush1.bf16.msra.mxu0 0
    %506 = vmatprep.mubr.bf16.mxu0 0
    %507 = vmatmul.mubr.bf16.gmra.mrb[0].mxu0 %v462
    %v508 = vpop.f32.mrb[0].mxu0
    %v509 = vadd.f32 %v440, %v508
    %v510 = vpop.f32.mrb[0].mxu0
    %v511 = vadd.f32 %v444, %v510
    %v512 = vpop.f32.mrb[0].mxu0
    %v513 = vpop.f32.mrb[0].mxu0
    %514 = vdwg.mxu0
    %515 = vmatprep.subr.bf16.mxu0 0
    %516 = vmatpush1.bf16.msra.mxu0 %v472
    %517 = vmatprep.subr.bf16.mxu0 0
    %518 = vmatpush1.bf16.msra.mxu0 0
    %519 = vmatprep.subr.bf16.mxu0 0
    %520 = vmatpush1.bf16.msra.mxu0 0
    %521 = vmatprep.subr.bf16.mxu0 0
    %522 = vmatpush1.bf16.msra.mxu0 0
    %523 = vmatprep.subr.bf16.mxu0 0
    %524 = vmatpush1.bf16.msra.mxu0 0
    %525 = vmatprep.subr.bf16.mxu0 0
    %526 = vmatpush1.bf16.msra.mxu0 0
    %527 = vmatprep.subr.bf16.mxu0 0
    %528 = vmatpush1.bf16.msra.mxu0 0
    %529 = vmatprep.subr.bf16.mxu0 0
    %530 = vmatpush1.bf16.msra.mxu0 0
    %531 = vmatprep.subr.bf16.mxu0 0
    %532 = vmatpush1.bf16.msra.mxu0 0
    %533 = vmatprep.subr.bf16.mxu0 0
    %534 = vmatpush1.bf16.msra.mxu0 0
    %535 = vmatprep.subr.bf16.mxu0 0
    %536 = vmatpush1.bf16.msra.mxu0 0
    %537 = vmatprep.subr.bf16.mxu0 0
    %538 = vmatpush1.bf16.msra.mxu0 0
    %539 = vmatprep.subr.bf16.mxu0 0
    %540 = vmatpush1.bf16.msra.mxu0 0
    %541 = vmatprep.subr.bf16.mxu0 0
    %542 = vmatpush1.bf16.msra.mxu0 0
    %543 = vmatprep.subr.bf16.mxu0 0
    %544 = vmatpush1.bf16.msra.mxu0 0
    %545 = vmatprep.subr.bf16.mxu0 0
    %546 = vmatpush1.bf16.msra.mxu0 0
    %547 = vmatprep.mubr.bf16.mxu0 0
    %548 = vmatmul.mubr.bf16.gmra.mrb[0].mxu0 %v462
    %v549 = vpop.f32.mrb[0].mxu0
    %v550 = vadd.f32 %v448, %v549
    %v551 = vpop.f32.mrb[0].mxu0
    %v552 = vpop.f32.mrb[0].mxu0
    %v553 = vpop.f32.mrb[0].mxu0
    %554 = vdwg.mxu0
    %v555 = vmax.f32 %v509, 0.0
    %v556 = vmax.f32 %v511, 0.0
    %v557 = vmax.f32 %v550, 0.0
    %v558 = vpack.c.bf16 %v204, %v204
    %v559 = vld [vmem:[#allocation16] sm:$0xf]
    %v560 = vld [vmem:[#allocation16 + $0x4] sm:$0xf]
    %v561 = vld [vmem:[#allocation16 + $0x8] sm:$0xf]
    %v562 = vld [vmem:[#allocation16 + $0xc] sm:$0xf]
    %v563 = vld [vmem:[#allocation16 + $0x10] sm:$0xf]
    %v564 = vld [vmem:[#allocation16 + $0x14] sm:$0xf]
    %v565 = vld [vmem:[#allocation16 + $0x18] sm:$0xf]
    %v566 = vld [vmem:[#allocation16 + $0x1c] sm:$0xf]
    %v567 = vld [vmem:[#allocation16 + $0x20] sm:$0xf]
    %v568 = vld [vmem:[#allocation16 + $0x24] sm:$0xf]
    %v569 = vld [vmem:[#allocation16 + $0x28] sm:$0xf]
    %v570 = vld [vmem:[#allocation16 + $0x2c] sm:$0xf]
    %v571 = vld [vmem:[#allocation16 + $0x30] sm:$0xf]
    %v572 = vld [vmem:[#allocation16 + $0x34] sm:$0xf]
    %v573 = vld [vmem:[#allocation16 + $0x38] sm:$0xf]
    %v574 = vld [vmem:[#allocation16 + $0x3c] sm:$0xf]
    %v575 = vpack.c.bf16 %v227, %v227
    %v576 = vld [vmem:[#allocation16 + $0x40] sm:$0xf]
    %v577 = vld [vmem:[#allocation16 + $0x44] sm:$0xf]
    %v578 = vld [vmem:[#allocation16 + $0x48] sm:$0xf]
    %v579 = vld [vmem:[#allocation16 + $0x4c] sm:$0xf]
    %v580 = vld [vmem:[#allocation16 + $0x50] sm:$0xf]
    %v581 = vld [vmem:[#allocation16 + $0x54] sm:$0xf]
    %v582 = vld [vmem:[#allocation16 + $0x58] sm:$0xf]
    %v583 = vld [vmem:[#allocation16 + $0x5c] sm:$0xf]
    %v584 = vld [vmem:[#allocation16 + $0x60] sm:$0xf]
    %v585 = vld [vmem:[#allocation16 + $0x64] sm:$0xf]
    %v586 = vld [vmem:[#allocation16 + $0x68] sm:$0xf]
    %v587 = vld [vmem:[#allocation16 + $0x6c] sm:$0xf]
    %v588 = vld [vmem:[#allocation16 + $0x70] sm:$0xf]
    %v589 = vld [vmem:[#allocation16 + $0x74] sm:$0xf]
    %v590 = vld [vmem:[#allocation16 + $0x78] sm:$0xf]
    %v591 = vld [vmem:[#allocation16 + $0x7c] sm:$0xf]
    %v608 = vunpack.c.l.b16 %v576
    %v609 = vunpack.c.l.b16 %v577
    %v610 = vunpack.c.l.b16 %v578
    %v611 = vunpack.c.l.b16 %v579
    %v612 = vunpack.c.l.b16 %v580
    %v613 = vunpack.c.l.b16 %v581
    %v614 = vunpack.c.l.b16 %v582
    %v615 = vunpack.c.l.b16 %v583
    %v616 = vunpack.c.l.b16 %v584
    %v617 = vunpack.c.l.b16 %v585
    %v618 = vunpack.c.l.b16 %v586
    %v619 = vunpack.c.l.b16 %v587
    %v620 = vunpack.c.l.b16 %v588
    %v621 = vunpack.c.l.b16 %v589
    %v622 = vunpack.c.l.b16 %v590
    %v623 = vunpack.c.l.b16 %v591
    %v624 = vpack.c.b16 %v609, %v608
    %v625 = vpack.c.b16 %v611, %v610
    %v626 = vpack.c.b16 %v613, %v612
    %v627 = vpack.c.b16 %v615, %v614
    %v628 = vpack.c.b16 %v617, %v616
    %v629 = vpack.c.b16 %v619, %v618
    %v630 = vpack.c.b16 %v621, %v620
    %v631 = vpack.c.b16 %v623, %v622
    %640 = vmatprep.subr.bf16.mxu0 0
    %641 = vmatpush1.bf16.msra.mxu0 %v624
    %642 = vmatprep.subr.bf16.mxu0 0
    %643 = vmatpush1.bf16.msra.mxu0 %v625
    %644 = vmatprep.subr.bf16.mxu0 0
    %645 = vmatpush1.bf16.msra.mxu0 %v626
    %646 = vmatprep.subr.bf16.mxu0 0
    %647 = vmatpush1.bf16.msra.mxu0 %v627
    %648 = vmatprep.subr.bf16.mxu0 0
    %649 = vmatpush1.bf16.msra.mxu0 %v628
    %650 = vmatprep.subr.bf16.mxu0 0
    %651 = vmatpush1.bf16.msra.mxu0 %v629
    %652 = vmatprep.subr.bf16.mxu0 0
    %653 = vmatpush1.bf16.msra.mxu0 %v630
    %654 = vmatprep.subr.bf16.mxu0 0
    %655 = vmatpush1.bf16.msra.mxu0 %v631
    %656 = vmatprep.subr.bf16.mxu0 0
    %657 = vmatpush1.bf16.msra.mxu0 0
    %658 = vmatprep.subr.bf16.mxu0 0
    %659 = vmatpush1.bf16.msra.mxu0 0
    %660 = vmatprep.subr.bf16.mxu0 0
    %661 = vmatpush1.bf16.msra.mxu0 0
    %662 = vmatprep.subr.bf16.mxu0 0
    %663 = vmatpush1.bf16.msra.mxu0 0
    %664 = vmatprep.subr.bf16.mxu0 0
    %665 = vmatpush1.bf16.msra.mxu0 0
    %666 = vmatprep.subr.bf16.mxu0 0
    %667 = vmatpush1.bf16.msra.mxu0 0
    %668 = vmatprep.subr.bf16.mxu0 0
    %669 = vmatpush1.bf16.msra.mxu0 0
    %670 = vmatprep.subr.bf16.mxu0 0
    %671 = vmatpush1.bf16.msra.mxu0 0
    %672 = vmatprep.mubr.bf16.mxu0 0
    %673 = vmatmul.mubr.bf16.gmra.mrb[0].mxu0 %v575
    %v674 = vpop.f32.mrb[0].mxu0
    %v675 = vadd.f32 0.0, %v674
    %v676 = vpop.f32.mrb[0].mxu0
    %v677 = vpop.f32.mrb[0].mxu0
    %v678 = vpop.f32.mrb[0].mxu0
    %679 = vdwg.mxu0
    %v696 = vunpack.c.l.b16 %v559
    %v697 = vunpack.c.l.b16 %v560
    %v698 = vunpack.c.l.b16 %v561
    %v699 = vunpack.c.l.b16 %v562
    %v700 = vunpack.c.l.b16 %v563
    %v701 = vunpack.c.l.b16 %v564
    %v702 = vunpack.c.l.b16 %v565
    %v703 = vunpack.c.l.b16 %v566
    %v704 = vunpack.c.l.b16 %v567
    %v705 = vunpack.c.l.b16 %v568
    %v706 = vunpack.c.l.b16 %v569
    %v707 = vunpack.c.l.b16 %v570
    %v708 = vunpack.c.l.b16 %v571
    %v709 = vunpack.c.l.b16 %v572
    %v710 = vunpack.c.l.b16 %v573
    %v711 = vunpack.c.l.b16 %v574
    %v712 = vpack.c.b16 %v697, %v696
    %v713 = vpack.c.b16 %v699, %v698
    %v714 = vpack.c.b16 %v701, %v700
    %v715 = vpack.c.b16 %v703, %v702
    %v716 = vpack.c.b16 %v705, %v704
    %v717 = vpack.c.b16 %v707, %v706
    %v718 = vpack.c.b16 %v709, %v708
    %v719 = vpack.c.b16 %v711, %v710
    %728 = vmatprep.subr.bf16.mxu0 0
    %729 = vmatpush1.bf16.msra.mxu0 %v712
    %730 = vmatprep.subr.bf16.mxu0 0
    %731 = vmatpush1.bf16.msra.mxu0 %v713
    %732 = vmatprep.subr.bf16.mxu0 0
    %733 = vmatpush1.bf16.msra.mxu0 %v714
    %734 = vmatprep.subr.bf16.mxu0 0
    %735 = vmatpush1.bf16.msra.mxu0 %v715
    %736 = vmatprep.subr.bf16.mxu0 0
    %737 = vmatpush1.bf16.msra.mxu0 %v716
    %738 = vmatprep.subr.bf16.mxu0 0
    %739 = vmatpush1.bf16.msra.mxu0 %v717
    %740 = vmatprep.subr.bf16.mxu0 0
    %741 = vmatpush1.bf16.msra.mxu0 %v718
    %742 = vmatprep.subr.bf16.mxu0 0
    %743 = vmatpush1.bf16.msra.mxu0 %v719
    %744 = vmatprep.subr.bf16.mxu0 0
    %745 = vmatpush1.bf16.msra.mxu0 0
    %746 = vmatprep.subr.bf16.mxu0 0
    %747 = vmatpush1.bf16.msra.mxu0 0
    %748 = vmatprep.subr.bf16.mxu0 0
    %749 = vmatpush1.bf16.msra.mxu0 0
    %750 = vmatprep.subr.bf16.mxu0 0
    %751 = vmatpush1.bf16.msra.mxu0 0
    %752 = vmatprep.subr.bf16.mxu0 0
    %753 = vmatpush1.bf16.msra.mxu0 0
    %754 = vmatprep.subr.bf16.mxu0 0
    %755 = vmatpush1.bf16.msra.mxu0 0
    %756 = vmatprep.subr.bf16.mxu0 0
    %757 = vmatpush1.bf16.msra.mxu0 0
    %758 = vmatprep.subr.bf16.mxu0 0
    %759 = vmatpush1.bf16.msra.mxu0 0
    %760 = vmatprep.mubr.bf16.mxu0 0
    %761 = vmatmul.mubr.bf16.gmra.mrb[0].mxu0 %v558
    %v762 = vpop.f32.mrb[0].mxu0
    %v763 = vadd.f32 %v675, %v762
    %v764 = vpop.f32.mrb[0].mxu0
    %v765 = vpop.f32.mrb[0].mxu0
    %v766 = vpop.f32.mrb[0].mxu0
    %767 = vdwg.mxu0
    %v768 = vpack.c.bf16 %v421, %v421
    %v769 = vpack.c.bf16 %v422, %v422
    %v770 = vpack.c.bf16 %v423, %v423
    %v771 = vpack.c.bf16 %v424, %v424
    %v772 = vpack.c.bf16 %v425, %v425
    %v773 = vld [vmem:[#allocation16 + $0x80] sm:$0xf]
    %v774 = vld [vmem:[#allocation16 + $0x84] sm:$0xf]
    %v775 = vld [vmem:[#allocation16 + $0x88] sm:$0xf]
    %v776 = vld [vmem:[#allocation16 + $0x8c] sm:$0xf]
    %v777 = vld [vmem:[#allocation16 + $0x90] sm:$0xf]
    %v778 = vld [vmem:[#allocation16 + $0x94] sm:$0xf]
    %v779 = vld [vmem:[#allocation16 + $0x98] sm:$0xf]
    %v780 = vld [vmem:[#allocation16 + $0x9c] sm:$0xf]
    %v781 = vld [vmem:[#allocation16 + $0xa0] sm:$0xf]
    %v782 = vld [vmem:[#allocation16 + $0xa4] sm:$0xf]
    %v783 = vld [vmem:[#allocation16 + $0xa8] sm:$0xf]
    %v784 = vld [vmem:[#allocation16 + $0xac] sm:$0xf]
    %v785 = vld [vmem:[#allocation16 + $0xb0] sm:$0xf]
    %v786 = vld [vmem:[#allocation16 + $0xb4] sm:$0xf]
    %v787 = vld [vmem:[#allocation16 + $0xb8] sm:$0xf]
    %v788 = vld [vmem:[#allocation16 + $0xbc] sm:$0xf]
    %v789 = vld [vmem:[#allocation16 + $0xc0] sm:$0xf]
    %v790 = vld [vmem:[#allocation16 + $0xc4] sm:$0xf]
    %v791 = vld [vmem:[#allocation16 + $0xc8] sm:$0xf]
    %v792 = vld [vmem:[#allocation16 + $0xcc] sm:$0xf]
    %v793 = vld [vmem:[#allocation16 + $0xd0] sm:$0xf]
    %v794 = vld [vmem:[#allocation16 + $0xd4] sm:$0xf]
    %v795 = vld [vmem:[#allocation16 + $0xd8] sm:$0xf]
    %v796 = vld [vmem:[#allocation16 + $0xdc] sm:$0xf]
    %v797 = vld [vmem:[#allocation16 + $0xe0] sm:$0xf]
    %v798 = vld [vmem:[#allocation16 + $0xe4] sm:$0xf]
    %v799 = vld [vmem:[#allocation16 + $0xe8] sm:$0xf]
    %v800 = vld [vmem:[#allocation16 + $0xec] sm:$0xf]
    %v801 = vld [vmem:[#allocation16 + $0xf0] sm:$0xf]
    %v802 = vld [vmem:[#allocation16 + $0xf4] sm:$0xf]
    %v803 = vld [vmem:[#allocation16 + $0xf8] sm:$0xf]
    %v804 = vld [vmem:[#allocation16 + $0xfc] sm:$0xf]
    %v805 = vld [vmem:[#allocation16 + $0x100] sm:$0xf]
    %v806 = vld [vmem:[#allocation16 + $0x104] sm:$0xf]
    %v807 = vld [vmem:[#allocation16 + $0x108] sm:$0xf]
    %v808 = vld [vmem:[#allocation16 + $0x10c] sm:$0xf]
    %v809 = vld [vmem:[#allocation16 + $0x110] sm:$0xf]
    %v810 = vld [vmem:[#allocation16 + $0x114] sm:$0xf]
    %v811 = vld [vmem:[#allocation16 + $0x118] sm:$0xf]
    %v812 = vld [vmem:[#allocation16 + $0x11c] sm:$0xf]
    %v813 = vld [vmem:[#allocation16 + $0x120] sm:$0xf]
    %v814 = vld [vmem:[#allocation16 + $0x124] sm:$0xf]
    %v815 = vld [vmem:[#allocation16 + $0x128] sm:$0xf]
    %v816 = vld [vmem:[#allocation16 + $0x12c] sm:$0xf]
    %v817 = vld [vmem:[#allocation16 + $0x130] sm:$0xf]
    %v818 = vld [vmem:[#allocation16 + $0x134] sm:$0xf]
    %v819 = vld [vmem:[#allocation16 + $0x138] sm:$0xf]
    %v820 = vld [vmem:[#allocation16 + $0x13c] sm:$0xf]
    %v821 = vld [vmem:[#allocation16 + $0x140] sm:$0xf]
    %v822 = vld [vmem:[#allocation16 + $0x144] sm:$0xf]
    %v823 = vld [vmem:[#allocation16 + $0x148] sm:$0xf]
    %v824 = vld [vmem:[#allocation16 + $0x14c] sm:$0xf]
    %v825 = vld [vmem:[#allocation16 + $0x150] sm:$0xf]
    %v826 = vld [vmem:[#allocation16 + $0x154] sm:$0xf]
    %v827 = vld [vmem:[#allocation16 + $0x158] sm:$0xf]
    %v828 = vld [vmem:[#allocation16 + $0x15c] sm:$0xf]
    %v829 = vld [vmem:[#allocation16 + $0x160] sm:$0xf]
    %v830 = vld [vmem:[#allocation16 + $0x164] sm:$0xf]
    %v831 = vld [vmem:[#allocation16 + $0x168] sm:$0xf]
    %v832 = vld [vmem:[#allocation16 + $0x16c] sm:$0xf]
    %v833 = vld [vmem:[#allocation16 + $0x170] sm:$0xf]
    %v834 = vld [vmem:[#allocation16 + $0x174] sm:$0xf]
    %v835 = vld [vmem:[#allocation16 + $0x178] sm:$0xf]
    %v836 = vld [vmem:[#allocation16 + $0x17c] sm:$0xf]
    %v837 = vld [vmem:[#allocation16 + $0x180] sm:$0xf]
    %v838 = vld [vmem:[#allocation16 + $0x184] sm:$0xf]
    %v839 = vld [vmem:[#allocation16 + $0x188] sm:$0xf]
    %v840 = vld [vmem:[#allocation16 + $0x18c] sm:$0xf]
    %v841 = vld [vmem:[#allocation16 + $0x190] sm:$0xf]
    %v842 = vld [vmem:[#allocation16 + $0x194] sm:$0xf]
    %v843 = vld [vmem:[#allocation16 + $0x198] sm:$0xf]
    %v844 = vld [vmem:[#allocation16 + $0x19c] sm:$0xf]
    %v845 = vld [vmem:[#allocation16 + $0x1a0] sm:$0xf]
    %v846 = vld [vmem:[#allocation16 + $0x1a4] sm:$0xf]
    %v847 = vld [vmem:[#allocation16 + $0x1a8] sm:$0xf]
    %v848 = vld [vmem:[#allocation16 + $0x1ac] sm:$0xf]
    %v849 = vld [vmem:[#allocation16 + $0x1b0] sm:$0xf]
    %v850 = vld [vmem:[#allocation16 + $0x1b4] sm:$0xf]
    %v851 = vld [vmem:[#allocation16 + $0x1b8] sm:$0xf]
    %v852 = vld [vmem:[#allocation16 + $0x1bc] sm:$0xf]
    %v933 = vunpack.c.l.b16 %v773
    %v934 = vunpack.c.l.b16 %v774
    %v935 = vunpack.c.l.b16 %v775
    %v936 = vunpack.c.l.b16 %v776
    %v937 = vunpack.c.l.b16 %v777
    %v938 = vunpack.c.l.b16 %v778
    %v939 = vunpack.c.l.b16 %v779
    %v940 = vunpack.c.l.b16 %v780
    %v941 = vunpack.c.l.b16 %v781
    %v942 = vunpack.c.l.b16 %v782
    %v943 = vunpack.c.l.b16 %v783
    %v944 = vunpack.c.l.b16 %v784
    %v945 = vunpack.c.l.b16 %v785
    %v946 = vunpack.c.l.b16 %v786
    %v947 = vunpack.c.l.b16 %v787
    %v948 = vunpack.c.l.b16 %v788
    %v949 = vunpack.c.l.b16 %v789
    %v950 = vunpack.c.l.b16 %v790
    %v951 = vunpack.c.l.b16 %v791
    %v952 = vunpack.c.l.b16 %v792
    %v953 = vunpack.c.l.b16 %v793
    %v954 = vunpack.c.l.b16 %v794
    %v955 = vunpack.c.l.b16 %v795
    %v956 = vunpack.c.l.b16 %v796
    %v957 = vunpack.c.l.b16 %v797
    %v958 = vunpack.c.l.b16 %v798
    %v959 = vunpack.c.l.b16 %v799
    %v960 = vunpack.c.l.b16 %v800
    %v961 = vunpack.c.l.b16 %v801
    %v962 = vunpack.c.l.b16 %v802
    %v963 = vunpack.c.l.b16 %v803
    %v964 = vunpack.c.l.b16 %v804
    %v965 = vunpack.c.l.b16 %v805
    %v966 = vunpack.c.l.b16 %v806
    %v967 = vunpack.c.l.b16 %v807
    %v968 = vunpack.c.l.b16 %v808
    %v969 = vunpack.c.l.b16 %v809
    %v970 = vunpack.c.l.b16 %v810
    %v971 = vunpack.c.l.b16 %v811
    %v972 = vunpack.c.l.b16 %v812
    %v973 = vunpack.c.l.b16 %v813
    %v974 = vunpack.c.l.b16 %v814
    %v975 = vunpack.c.l.b16 %v815
    %v976 = vunpack.c.l.b16 %v816
    %v977 = vunpack.c.l.b16 %v817
    %v978 = vunpack.c.l.b16 %v818
    %v979 = vunpack.c.l.b16 %v819
    %v980 = vunpack.c.l.b16 %v820
    %v981 = vunpack.c.l.b16 %v821
    %v982 = vunpack.c.l.b16 %v822
    %v983 = vunpack.c.l.b16 %v823
    %v984 = vunpack.c.l.b16 %v824
    %v985 = vunpack.c.l.b16 %v825
    %v986 = vunpack.c.l.b16 %v826
    %v987 = vunpack.c.l.b16 %v827
    %v988 = vunpack.c.l.b16 %v828
    %v989 = vunpack.c.l.b16 %v829
    %v990 = vunpack.c.l.b16 %v830
    %v991 = vunpack.c.l.b16 %v831
    %v992 = vunpack.c.l.b16 %v832
    %v993 = vunpack.c.l.b16 %v833
    %v994 = vunpack.c.l.b16 %v834
    %v995 = vunpack.c.l.b16 %v835
    %v996 = vunpack.c.l.b16 %v836
    %v997 = vunpack.c.l.b16 %v837
    %v998 = vunpack.c.l.b16 %v838
    %v999 = vunpack.c.l.b16 %v839
    %v1000 = vunpack.c.l.b16 %v840
    %v1001 = vunpack.c.l.b16 %v841
    %v1002 = vunpack.c.l.b16 %v842
    %v1003 = vunpack.c.l.b16 %v843
    %v1004 = vunpack.c.l.b16 %v844
    %v1005 = vunpack.c.l.b16 %v845
    %v1006 = vunpack.c.l.b16 %v846
    %v1007 = vunpack.c.l.b16 %v847
    %v1008 = vunpack.c.l.b16 %v848
    %v1009 = vunpack.c.l.b16 %v849
    %v1010 = vunpack.c.l.b16 %v850
    %v1011 = vunpack.c.l.b16 %v851
    %v1012 = vunpack.c.l.b16 %v852
    %v1013 = vpack.c.b16 %v934, %v933
    %v1014 = vpack.c.b16 %v936, %v935
    %v1015 = vpack.c.b16 %v938, %v937
    %v1016 = vpack.c.b16 %v940, %v939
    %v1017 = vpack.c.b16 %v942, %v941
    %v1018 = vpack.c.b16 %v944, %v943
    %v1019 = vpack.c.b16 %v946, %v945
    %v1020 = vpack.c.b16 %v948, %v947
    %v1021 = vpack.c.b16 %v950, %v949
    %v1022 = vpack.c.b16 %v952, %v951
    %v1023 = vpack.c.b16 %v954, %v953
    %v1024 = vpack.c.b16 %v956, %v955
    %v1025 = vpack.c.b16 %v958, %v957
    %v1026 = vpack.c.b16 %v960, %v959
    %v1027 = vpack.c.b16 %v962, %v961
    %v1028 = vpack.c.b16 %v964, %v963
    %v1029 = vpack.c.b16 %v966, %v965
    %v1030 = vpack.c.b16 %v968, %v967
    %v1031 = vpack.c.b16 %v970, %v969
    %v1032 = vpack.c.b16 %v972, %v971
    %v1033 = vpack.c.b16 %v974, %v973
    %v1034 = vpack.c.b16 %v976, %v975
    %v1035 = vpack.c.b16 %v978, %v977
    %v1036 = vpack.c.b16 %v980, %v979
    %v1037 = vpack.c.b16 %v982, %v981
    %v1038 = vpack.c.b16 %v984, %v983
    %v1039 = vpack.c.b16 %v986, %v985
    %v1040 = vpack.c.b16 %v988, %v987
    %v1041 = vpack.c.b16 %v990, %v989
    %v1042 = vpack.c.b16 %v992, %v991
    %v1043 = vpack.c.b16 %v994, %v993
    %v1044 = vpack.c.b16 %v996, %v995
    %v1045 = vpack.c.b16 %v998, %v997
    %v1046 = vpack.c.b16 %v1000, %v999
    %v1047 = vpack.c.b16 %v1002, %v1001
    %v1048 = vpack.c.b16 %v1004, %v1003
    %v1049 = vpack.c.b16 %v1006, %v1005
    %v1050 = vpack.c.b16 %v1008, %v1007
    %v1051 = vpack.c.b16 %v1010, %v1009
    %v1052 = vpack.c.b16 %v1012, %v1011
    %1093 = vmatprep.subr.bf16.mxu0 0
    %1094 = vmatpush1.bf16.msra.mxu0 %v1013
    %1095 = vmatprep.subr.bf16.mxu0 0
    %1096 = vmatpush1.bf16.msra.mxu0 %v1014
    %1097 = vmatprep.subr.bf16.mxu0 0
    %1098 = vmatpush1.bf16.msra.mxu0 %v1015
    %1099 = vmatprep.subr.bf16.mxu0 0
    %1100 = vmatpush1.bf16.msra.mxu0 %v1016
    %1101 = vmatprep.subr.bf16.mxu0 0
    %1102 = vmatpush1.bf16.msra.mxu0 %v1017
    %1103 = vmatprep.subr.bf16.mxu0 0
    %1104 = vmatpush1.bf16.msra.mxu0 %v1018
    %1105 = vmatprep.subr.bf16.mxu0 0
    %1106 = vmatpush1.bf16.msra.mxu0 %v1019
    %1107 = vmatprep.subr.bf16.mxu0 0
    %1108 = vmatpush1.bf16.msra.mxu0 %v1020
    %1109 = vmatprep.subr.bf16.mxu0 0
    %1110 = vmatpush1.bf16.msra.mxu0 %v1021
    %1111 = vmatprep.subr.bf16.mxu0 0
    %1112 = vmatpush1.bf16.msra.mxu0 %v1022
    %1113 = vmatprep.subr.bf16.mxu0 0
    %1114 = vmatpush1.bf16.msra.mxu0 %v1023
    %1115 = vmatprep.subr.bf16.mxu0 0
    %1116 = vmatpush1.bf16.msra.mxu0 %v1024
    %1117 = vmatprep.subr.bf16.mxu0 0
    %1118 = vmatpush1.bf16.msra.mxu0 %v1025
    %1119 = vmatprep.subr.bf16.mxu0 0
    %1120 = vmatpush1.bf16.msra.mxu0 %v1026
    %1121 = vmatprep.subr.bf16.mxu0 0
    %1122 = vmatpush1.bf16.msra.mxu0 %v1027
    %1123 = vmatprep.subr.bf16.mxu0 0
    %1124 = vmatpush1.bf16.msra.mxu0 %v1028
    %1125 = vmatprep.mubr.bf16.mxu0 %v769
    %1126 = vmatmul.mubr.bf16.gmra.mrb[0].mxu0 %v768
    %v1127 = vpop.f32.mrb[0].mxu0
    %v1128 = vadd.f32 0.0, %v1127
    %v1129 = vpop.f32.mrb[0].mxu0
    %v1130 = vpop.f32.mrb[0].mxu0
    %v1131 = vpop.f32.mrb[0].mxu0
    %1132 = vdwg.mxu0
    %1133 = vmatprep.subr.bf16.mxu0 0
    %1134 = vmatpush1.bf16.msra.mxu0 %v1029
    %1135 = vmatprep.subr.bf16.mxu0 0
    %1136 = vmatpush1.bf16.msra.mxu0 %v1030
    %1137 = vmatprep.subr.bf16.mxu0 0
    %1138 = vmatpush1.bf16.msra.mxu0 %v1031
    %1139 = vmatprep.subr.bf16.mxu0 0
    %1140 = vmatpush1.bf16.msra.mxu0 %v1032
    %1141 = vmatprep.subr.bf16.mxu0 0
    %1142 = vmatpush1.bf16.msra.mxu0 %v1033
    %1143 = vmatprep.subr.bf16.mxu0 0
    %1144 = vmatpush1.bf16.msra.mxu0 %v1034
    %1145 = vmatprep.subr.bf16.mxu0 0
    %1146 = vmatpush1.bf16.msra.mxu0 %v1035
    %1147 = vmatprep.subr.bf16.mxu0 0
    %1148 = vmatpush1.bf16.msra.mxu0 %v1036
    %1149 = vmatprep.subr.bf16.mxu0 0
    %1150 = vmatpush1.bf16.msra.mxu0 %v1037
    %1151 = vmatprep.subr.bf16.mxu0 0
    %1152 = vmatpush1.bf16.msra.mxu0 %v1038
    %1153 = vmatprep.subr.bf16.mxu0 0
    %1154 = vmatpush1.bf16.msra.mxu0 %v1039
    %1155 = vmatprep.subr.bf16.mxu0 0
    %1156 = vmatpush1.bf16.msra.mxu0 %v1040
    %1157 = vmatprep.subr.bf16.mxu0 0
    %1158 = vmatpush1.bf16.msra.mxu0 %v1041
    %1159 = vmatprep.subr.bf16.mxu0 0
    %1160 = vmatpush1.bf16.msra.mxu0 %v1042
    %1161 = vmatprep.subr.bf16.mxu0 0
    %1162 = vmatpush1.bf16.msra.mxu0 %v1043
    %1163 = vmatprep.subr.bf16.mxu0 0
    %1164 = vmatpush1.bf16.msra.mxu0 %v1044
    %1165 = vmatprep.mubr.bf16.mxu0 %v771
    %1166 = vmatmul.mubr.bf16.gmra.mrb[0].mxu0 %v770
    %v1167 = vpop.f32.mrb[0].mxu0
    %v1168 = vadd.f32 %v1128, %v1167
    %v1169 = vpop.f32.mrb[0].mxu0
    %v1170 = vpop.f32.mrb[0].mxu0
    %v1171 = vpop.f32.mrb[0].mxu0
    %1172 = vdwg.mxu0
    %1173 = vmatprep.subr.bf16.mxu0 0
    %1174 = vmatpush1.bf16.msra.mxu0 %v1045
    %1175 = vmatprep.subr.bf16.mxu0 0
    %1176 = vmatpush1.bf16.msra.mxu0 %v1046
    %1177 = vmatprep.subr.bf16.mxu0 0
    %1178 = vmatpush1.bf16.msra.mxu0 %v1047
    %1179 = vmatprep.subr.bf16.mxu0 0
    %1180 = vmatpush1.bf16.msra.mxu0 %v1048
    %1181 = vmatprep.subr.bf16.mxu0 0
    %1182 = vmatpush1.bf16.msra.mxu0 %v1049
    %1183 = vmatprep.subr.bf16.mxu0 0
    %1184 = vmatpush1.bf16.msra.mxu0 %v1050
    %1185 = vmatprep.subr.bf16.mxu0 0
    %1186 = vmatpush1.bf16.msra.mxu0 %v1051
    %1187 = vmatprep.subr.bf16.mxu0 0
    %1188 = vmatpush1.bf16.msra.mxu0 %v1052
    %1189 = vmatprep.subr.bf16.mxu0 0
    %1190 = vmatpush1.bf16.msra.mxu0 0
    %1191 = vmatprep.subr.bf16.mxu0 0
    %1192 = vmatpush1.bf16.msra.mxu0 0
    %1193 = vmatprep.subr.bf16.mxu0 0
    %1194 = vmatpush1.bf16.msra.mxu0 0
    %1195 = vmatprep.subr.bf16.mxu0 0
    %1196 = vmatpush1.bf16.msra.mxu0 0
    %1197 = vmatprep.subr.bf16.mxu0 0
    %1198 = vmatpush1.bf16.msra.mxu0 0
    %1199 = vmatprep.subr.bf16.mxu0 0
    %1200 = vmatpush1.bf16.msra.mxu0 0
    %1201 = vmatprep.subr.bf16.mxu0 0
    %1202 = vmatpush1.bf16.msra.mxu0 0
    %1203 = vmatprep.subr.bf16.mxu0 0
    %1204 = vmatpush1.bf16.msra.mxu0 0
    %1205 = vmatprep.mubr.bf16.mxu0 0
    %1206 = vmatmul.mubr.bf16.gmra.mrb[0].mxu0 %v772
    %v1207 = vpop.f32.mrb[0].mxu0
    %v1208 = vadd.f32 %v1168, %v1207
    %v1209 = vpop.f32.mrb[0].mxu0
    %v1210 = vpop.f32.mrb[0].mxu0
    %v1211 = vpop.f32.mrb[0].mxu0
    %1212 = vdwg.mxu0
    %v1213 = vadd.f32 %v763, %v1208
    %v1214 = vpack.c.bf16 %v426, %v426
    %v1215 = vpack.c.bf16 %v427, %v427
    %v1216 = vpack.c.bf16 %v428, %v428
    %v1217 = vpack.c.bf16 %v429, %v429
    %v1218 = vpack.c.bf16 %v430, %v430
    %v1219 = vld [vmem:[#allocation16 + $0x1c0] sm:$0xf]
    %v1220 = vld [vmem:[#allocation16 + $0x1c4] sm:$0xf]
    %v1221 = vld [vmem:[#allocation16 + $0x1c8] sm:$0xf]
    %v1222 = vld [vmem:[#allocation16 + $0x1cc] sm:$0xf]
    %v1223 = vld [vmem:[#allocation16 + $0x1d0] sm:$0xf]
    %v1224 = vld [vmem:[#allocation16 + $0x1d4] sm:$0xf]
    %v1225 = vld [vmem:[#allocation16 + $0x1d8] sm:$0xf]
    %v1226 = vld [vmem:[#allocation16 + $0x1dc] sm:$0xf]
    %v1227 = vld [vmem:[#allocation16 + $0x1e0] sm:$0xf]
    %v1228 = vld [vmem:[#allocation16 + $0x1e4] sm:$0xf]
    %v1229 = vld [vmem:[#allocation16 + $0x1e8] sm:$0xf]
    %v1230 = vld [vmem:[#allocation16 + $0x1ec] sm:$0xf]
    %v1231 = vld [vmem:[#allocation16 + $0x1f0] sm:$0xf]
    %v1232 = vld [vmem:[#allocation16 + $0x1f4] sm:$0xf]
    %v1233 = vld [vmem:[#allocation16 + $0x1f8] sm:$0xf]
    %v1234 = vld [vmem:[#allocation16 + $0x1fc] sm:$0xf]
    %v1235 = vld [vmem:[#allocation16 + $0x200] sm:$0xf]
    %v1236 = vld [vmem:[#allocation16 + $0x204] sm:$0xf]
    %v1237 = vld [vmem:[#allocation16 + $0x208] sm:$0xf]
    %v1238 = vld [vmem:[#allocation16 + $0x20c] sm:$0xf]
    %v1239 = vld [vmem:[#allocation16 + $0x210] sm:$0xf]
    %v1240 = vld [vmem:[#allocation16 + $0x214] sm:$0xf]
    %v1241 = vld [vmem:[#allocation16 + $0x218] sm:$0xf]
    %v1242 = vld [vmem:[#allocation16 + $0x21c] sm:$0xf]
    %v1243 = vld [vmem:[#allocation16 + $0x220] sm:$0xf]
    %v1244 = vld [vmem:[#allocation16 + $0x224] sm:$0xf]
    %v1245 = vld [vmem:[#allocation16 + $0x228] sm:$0xf]
    %v1246 = vld [vmem:[#allocation16 + $0x22c] sm:$0xf]
    %v1247 = vld [vmem:[#allocation16 + $0x230] sm:$0xf]
    %v1248 = vld [vmem:[#allocation16 + $0x234] sm:$0xf]
    %v1249 = vld [vmem:[#allocation16 + $0x238] sm:$0xf]
    %v1250 = vld [vmem:[#allocation16 + $0x23c] sm:$0xf]
    %v1251 = vld [vmem:[#allocation16 + $0x240] sm:$0xf]
    %v1252 = vld [vmem:[#allocation16 + $0x244] sm:$0xf]
    %v1253 = vld [vmem:[#allocation16 + $0x248] sm:$0xf]
    %v1254 = vld [vmem:[#allocation16 + $0x24c] sm:$0xf]
    %v1255 = vld [vmem:[#allocation16 + $0x250] sm:$0xf]
    %v1256 = vld [vmem:[#allocation16 + $0x254] sm:$0xf]
    %v1257 = vld [vmem:[#allocation16 + $0x258] sm:$0xf]
    %v1258 = vld [vmem:[#allocation16 + $0x25c] sm:$0xf]
    %v1259 = vld [vmem:[#allocation16 + $0x260] sm:$0xf]
    %v1260 = vld [vmem:[#allocation16 + $0x264] sm:$0xf]
    %v1261 = vld [vmem:[#allocation16 + $0x268] sm:$0xf]
    %v1262 = vld [vmem:[#allocation16 + $0x26c] sm:$0xf]
    %v1263 = vld [vmem:[#allocation16 + $0x270] sm:$0xf]
    %v1264 = vld [vmem:[#allocation16 + $0x274] sm:$0xf]
    %v1265 = vld [vmem:[#allocation16 + $0x278] sm:$0xf]
    %v1266 = vld [vmem:[#allocation16 + $0x27c] sm:$0xf]
    %v1267 = vld [vmem:[#allocation16 + $0x280] sm:$0xf]
    %v1268 = vld [vmem:[#allocation16 + $0x284] sm:$0xf]
    %v1269 = vld [vmem:[#allocation16 + $0x288] sm:$0xf]
    %v1270 = vld [vmem:[#allocation16 + $0x28c] sm:$0xf]
    %v1271 = vld [vmem:[#allocation16 + $0x290] sm:$0xf]
    %v1272 = vld [vmem:[#allocation16 + $0x294] sm:$0xf]
    %v1273 = vld [vmem:[#allocation16 + $0x298] sm:$0xf]
    %v1274 = vld [vmem:[#allocation16 + $0x29c] sm:$0xf]
    %v1275 = vld [vmem:[#allocation16 + $0x2a0] sm:$0xf]
    %v1276 = vld [vmem:[#allocation16 + $0x2a4] sm:$0xf]
    %v1277 = vld [vmem:[#allocation16 + $0x2a8] sm:$0xf]
    %v1278 = vld [vmem:[#allocation16 + $0x2ac] sm:$0xf]
    %v1279 = vld [vmem:[#allocation16 + $0x2b0] sm:$0xf]
    %v1280 = vld [vmem:[#allocation16 + $0x2b4] sm:$0xf]
    %v1281 = vld [vmem:[#allocation16 + $0x2b8] sm:$0xf]
    %v1282 = vld [vmem:[#allocation16 + $0x2bc] sm:$0xf]
    %v1283 = vld [vmem:[#allocation16 + $0x2c0] sm:$0xf]
    %v1284 = vld [vmem:[#allocation16 + $0x2c4] sm:$0xf]
    %v1285 = vld [vmem:[#allocation16 + $0x2c8] sm:$0xf]
    %v1286 = vld [vmem:[#allocation16 + $0x2cc] sm:$0xf]
    %v1287 = vld [vmem:[#allocation16 + $0x2d0] sm:$0xf]
    %v1288 = vld [vmem:[#allocation16 + $0x2d4] sm:$0xf]
    %v1289 = vld [vmem:[#allocation16 + $0x2d8] sm:$0xf]
    %v1290 = vld [vmem:[#allocation16 + $0x2dc] sm:$0xf]
    %v1291 = vld [vmem:[#allocation16 + $0x2e0] sm:$0xf]
    %v1292 = vld [vmem:[#allocation16 + $0x2e4] sm:$0xf]
    %v1293 = vld [vmem:[#allocation16 + $0x2e8] sm:$0xf]
    %v1294 = vld [vmem:[#allocation16 + $0x2ec] sm:$0xf]
    %v1295 = vld [vmem:[#allocation16 + $0x2f0] sm:$0xf]
    %v1296 = vld [vmem:[#allocation16 + $0x2f4] sm:$0xf]
    %v1297 = vld [vmem:[#allocation16 + $0x2f8] sm:$0xf]
    %v1298 = vld [vmem:[#allocation16 + $0x2fc] sm:$0xf]
    %v1379 = vunpack.c.l.b16 %v1219
    %v1380 = vunpack.c.l.b16 %v1220
    %v1381 = vunpack.c.l.b16 %v1221
    %v1382 = vunpack.c.l.b16 %v1222
    %v1383 = vunpack.c.l.b16 %v1223
    %v1384 = vunpack.c.l.b16 %v1224
    %v1385 = vunpack.c.l.b16 %v1225
    %v1386 = vunpack.c.l.b16 %v1226
    %v1387 = vunpack.c.l.b16 %v1227
    %v1388 = vunpack.c.l.b16 %v1228
    %v1389 = vunpack.c.l.b16 %v1229
    %v1390 = vunpack.c.l.b16 %v1230
    %v1391 = vunpack.c.l.b16 %v1231
    %v1392 = vunpack.c.l.b16 %v1232
    %v1393 = vunpack.c.l.b16 %v1233
    %v1394 = vunpack.c.l.b16 %v1234
    %v1395 = vunpack.c.l.b16 %v1235
    %v1396 = vunpack.c.l.b16 %v1236
    %v1397 = vunpack.c.l.b16 %v1237
    %v1398 = vunpack.c.l.b16 %v1238
    %v1399 = vunpack.c.l.b16 %v1239
    %v1400 = vunpack.c.l.b16 %v1240
    %v1401 = vunpack.c.l.b16 %v1241
    %v1402 = vunpack.c.l.b16 %v1242
    %v1403 = vunpack.c.l.b16 %v1243
    %v1404 = vunpack.c.l.b16 %v1244
    %v1405 = vunpack.c.l.b16 %v1245
    %v1406 = vunpack.c.l.b16 %v1246
    %v1407 = vunpack.c.l.b16 %v1247
    %v1408 = vunpack.c.l.b16 %v1248
    %v1409 = vunpack.c.l.b16 %v1249
    %v1410 = vunpack.c.l.b16 %v1250
    %v1411 = vunpack.c.l.b16 %v1251
    %v1412 = vunpack.c.l.b16 %v1252
    %v1413 = vunpack.c.l.b16 %v1253
    %v1414 = vunpack.c.l.b16 %v1254
    %v1415 = vunpack.c.l.b16 %v1255
    %v1416 = vunpack.c.l.b16 %v1256
    %v1417 = vunpack.c.l.b16 %v1257
    %v1418 = vunpack.c.l.b16 %v1258
    %v1419 = vunpack.c.l.b16 %v1259
    %v1420 = vunpack.c.l.b16 %v1260
    %v1421 = vunpack.c.l.b16 %v1261
    %v1422 = vunpack.c.l.b16 %v1262
    %v1423 = vunpack.c.l.b16 %v1263
    %v1424 = vunpack.c.l.b16 %v1264
    %v1425 = vunpack.c.l.b16 %v1265
    %v1426 = vunpack.c.l.b16 %v1266
    %v1427 = vunpack.c.l.b16 %v1267
    %v1428 = vunpack.c.l.b16 %v1268
    %v1429 = vunpack.c.l.b16 %v1269
    %v1430 = vunpack.c.l.b16 %v1270
    %v1431 = vunpack.c.l.b16 %v1271
    %v1432 = vunpack.c.l.b16 %v1272
    %v1433 = vunpack.c.l.b16 %v1273
    %v1434 = vunpack.c.l.b16 %v1274
    %v1435 = vunpack.c.l.b16 %v1275
    %v1436 = vunpack.c.l.b16 %v1276
    %v1437 = vunpack.c.l.b16 %v1277
    %v1438 = vunpack.c.l.b16 %v1278
    %v1439 = vunpack.c.l.b16 %v1279
    %v1440 = vunpack.c.l.b16 %v1280
    %v1441 = vunpack.c.l.b16 %v1281
    %v1442 = vunpack.c.l.b16 %v1282
    %v1443 = vunpack.c.l.b16 %v1283
    %v1444 = vunpack.c.l.b16 %v1284
    %v1445 = vunpack.c.l.b16 %v1285
    %v1446 = vunpack.c.l.b16 %v1286
    %v1447 = vunpack.c.l.b16 %v1287
    %v1448 = vunpack.c.l.b16 %v1288
    %v1449 = vunpack.c.l.b16 %v1289
    %v1450 = vunpack.c.l.b16 %v1290
    %v1451 = vunpack.c.l.b16 %v1291
    %v1452 = vunpack.c.l.b16 %v1292
    %v1453 = vunpack.c.l.b16 %v1293
    %v1454 = vunpack.c.l.b16 %v1294
    %v1455 = vunpack.c.l.b16 %v1295
    %v1456 = vunpack.c.l.b16 %v1296
    %v1457 = vunpack.c.l.b16 %v1297
    %v1458 = vunpack.c.l.b16 %v1298
    %v1459 = vpack.c.b16 %v1380, %v1379
    %v1460 = vpack.c.b16 %v1382, %v1381
    %v1461 = vpack.c.b16 %v1384, %v1383
    %v1462 = vpack.c.b16 %v1386, %v1385
    %v1463 = vpack.c.b16 %v1388, %v1387
    %v1464 = vpack.c.b16 %v1390, %v1389
    %v1465 = vpack.c.b16 %v1392, %v1391
    %v1466 = vpack.c.b16 %v1394, %v1393
    %v1467 = vpack.c.b16 %v1396, %v1395
    %v1468 = vpack.c.b16 %v1398, %v1397
    %v1469 = vpack.c.b16 %v1400, %v1399
    %v1470 = vpack.c.b16 %v1402, %v1401
    %v1471 = vpack.c.b16 %v1404, %v1403
    %v1472 = vpack.c.b16 %v1406, %v1405
    %v1473 = vpack.c.b16 %v1408, %v1407
    %v1474 = vpack.c.b16 %v1410, %v1409
    %v1475 = vpack.c.b16 %v1412, %v1411
    %v1476 = vpack.c.b16 %v1414, %v1413
    %v1477 = vpack.c.b16 %v1416, %v1415
    %v1478 = vpack.c.b16 %v1418, %v1417
    %v1479 = vpack.c.b16 %v1420, %v1419
    %v1480 = vpack.c.b16 %v1422, %v1421
    %v1481 = vpack.c.b16 %v1424, %v1423
    %v1482 = vpack.c.b16 %v1426, %v1425
    %v1483 = vpack.c.b16 %v1428, %v1427
    %v1484 = vpack.c.b16 %v1430, %v1429
    %v1485 = vpack.c.b16 %v1432, %v1431
    %v1486 = vpack.c.b16 %v1434, %v1433
    %v1487 = vpack.c.b16 %v1436, %v1435
    %v1488 = vpack.c.b16 %v1438, %v1437
    %v1489 = vpack.c.b16 %v1440, %v1439
    %v1490 = vpack.c.b16 %v1442, %v1441
    %v1491 = vpack.c.b16 %v1444, %v1443
    %v1492 = vpack.c.b16 %v1446, %v1445
    %v1493 = vpack.c.b16 %v1448, %v1447
    %v1494 = vpack.c.b16 %v1450, %v1449
    %v1495 = vpack.c.b16 %v1452, %v1451
    %v1496 = vpack.c.b16 %v1454, %v1453
    %v1497 = vpack.c.b16 %v1456, %v1455
    %v1498 = vpack.c.b16 %v1458, %v1457
    %1539 = vmatprep.subr.bf16.mxu0 0
    %1540 = vmatpush1.bf16.msra.mxu0 %v1459
    %1541 = vmatprep.subr.bf16.mxu0 0
    %1542 = vmatpush1.bf16.msra.mxu0 %v1460
    %1543 = vmatprep.subr.bf16.mxu0 0
    %1544 = vmatpush1.bf16.msra.mxu0 %v1461
    %1545 = vmatprep.subr.bf16.mxu0 0
    %1546 = vmatpush1.bf16.msra.mxu0 %v1462
    %1547 = vmatprep.subr.bf16.mxu0 0
    %1548 = vmatpush1.bf16.msra.mxu0 %v1463
    %1549 = vmatprep.subr.bf16.mxu0 0
    %1550 = vmatpush1.bf16.msra.mxu0 %v1464
    %1551 = vmatprep.subr.bf16.mxu0 0
    %1552 = vmatpush1.bf16.msra.mxu0 %v1465
    %1553 = vmatprep.subr.bf16.mxu0 0
    %1554 = vmatpush1.bf16.msra.mxu0 %v1466
    %1555 = vmatprep.subr.bf16.mxu0 0
    %1556 = vmatpush1.bf16.msra.mxu0 %v1467
    %1557 = vmatprep.subr.bf16.mxu0 0
    %1558 = vmatpush1.bf16.msra.mxu0 %v1468
    %1559 = vmatprep.subr.bf16.mxu0 0
    %1560 = vmatpush1.bf16.msra.mxu0 %v1469
    %1561 = vmatprep.subr.bf16.mxu0 0
    %1562 = vmatpush1.bf16.msra.mxu0 %v1470
    %1563 = vmatprep.subr.bf16.mxu0 0
    %1564 = vmatpush1.bf16.msra.mxu0 %v1471
    %1565 = vmatprep.subr.bf16.mxu0 0
    %1566 = vmatpush1.bf16.msra.mxu0 %v1472
    %1567 = vmatprep.subr.bf16.mxu0 0
    %1568 = vmatpush1.bf16.msra.mxu0 %v1473
    %1569 = vmatprep.subr.bf16.mxu0 0
    %1570 = vmatpush1.bf16.msra.mxu0 %v1474
    %1571 = vmatprep.mubr.bf16.mxu0 %v1215
    %1572 = vmatmul.mubr.bf16.gmra.mrb[0].mxu0 %v1214
    %v1573 = vpop.f32.mrb[0].mxu0
    %v1574 = vadd.f32 0.0, %v1573
    %v1575 = vpop.f32.mrb[0].mxu0
    %v1576 = vpop.f32.mrb[0].mxu0
    %v1577 = vpop.f32.mrb[0].mxu0
    %1578 = vdwg.mxu0
    %1579 = vmatprep.subr.bf16.mxu0 0
    %1580 = vmatpush1.bf16.msra.mxu0 %v1475
    %1581 = vmatprep.subr.bf16.mxu0 0
    %1582 = vmatpush1.bf16.msra.mxu0 %v1476
    %1583 = vmatprep.subr.bf16.mxu0 0
    %1584 = vmatpush1.bf16.msra.mxu0 %v1477
    %1585 = vmatprep.subr.bf16.mxu0 0
    %1586 = vmatpush1.bf16.msra.mxu0 %v1478
    %1587 = vmatprep.subr.bf16.mxu0 0
    %1588 = vmatpush1.bf16.msra.mxu0 %v1479
    %1589 = vmatprep.subr.bf16.mxu0 0
    %1590 = vmatpush1.bf16.msra.mxu0 %v1480
    %1591 = vmatprep.subr.bf16.mxu0 0
    %1592 = vmatpush1.bf16.msra.mxu0 %v1481
    %1593 = vmatprep.subr.bf16.mxu0 0
    %1594 = vmatpush1.bf16.msra.mxu0 %v1482
    %1595 = vmatprep.subr.bf16.mxu0 0
    %1596 = vmatpush1.bf16.msra.mxu0 %v1483
    %1597 = vmatprep.subr.bf16.mxu0 0
    %1598 = vmatpush1.bf16.msra.mxu0 %v1484
    %1599 = vmatprep.subr.bf16.mxu0 0
    %1600 = vmatpush1.bf16.msra.mxu0 %v1485
    %1601 = vmatprep.subr.bf16.mxu0 0
    %1602 = vmatpush1.bf16.msra.mxu0 %v1486
    %1603 = vmatprep.subr.bf16.mxu0 0
    %1604 = vmatpush1.bf16.msra.mxu0 %v1487
    %1605 = vmatprep.subr.bf16.mxu0 0
    %1606 = vmatpush1.bf16.msra.mxu0 %v1488
    %1607 = vmatprep.subr.bf16.mxu0 0
    %1608 = vmatpush1.bf16.msra.mxu0 %v1489
    %1609 = vmatprep.subr.bf16.mxu0 0
    %1610 = vmatpush1.bf16.msra.mxu0 %v1490
    %1611 = vmatprep.mubr.bf16.mxu0 %v1217
    %1612 = vmatmul.mubr.bf16.gmra.mrb[0].mxu0 %v1216
    %v1613 = vpop.f32.mrb[0].mxu0
    %v1614 = vadd.f32 %v1574, %v1613
    %v1615 = vpop.f32.mrb[0].mxu0
    %v1616 = vpop.f32.mrb[0].mxu0
    %v1617 = vpop.f32.mrb[0].mxu0
    %1618 = vdwg.mxu0
    %1619 = vmatprep.subr.bf16.mxu0 0
    %1620 = vmatpush1.bf16.msra.mxu0 %v1491
    %1621 = vmatprep.subr.bf16.mxu0 0
    %1622 = vmatpush1.bf16.msra.mxu0 %v1492
    %1623 = vmatprep.subr.bf16.mxu0 0
    %1624 = vmatpush1.bf16.msra.mxu0 %v1493
    %1625 = vmatprep.subr.bf16.mxu0 0
    %1626 = vmatpush1.bf16.msra.mxu0 %v1494
    %1627 = vmatprep.subr.bf16.mxu0 0
    %1628 = vmatpush1.bf16.msra.mxu0 %v1495
    %1629 = vmatprep.subr.bf16.mxu0 0
    %1630 = vmatpush1.bf16.msra.mxu0 %v1496
    %1631 = vmatprep.subr.bf16.mxu0 0
    %1632 = vmatpush1.bf16.msra.mxu0 %v1497
    %1633 = vmatprep.subr.bf16.mxu0 0
    %1634 = vmatpush1.bf16.msra.mxu0 %v1498
    %1635 = vmatprep.subr.bf16.mxu0 0
    %1636 = vmatpush1.bf16.msra.mxu0 0
    %1637 = vmatprep.subr.bf16.mxu0 0
    %1638 = vmatpush1.bf16.msra.mxu0 0
    %1639 = vmatprep.subr.bf16.mxu0 0
    %1640 = vmatpush1.bf16.msra.mxu0 0
    %1641 = vmatprep.subr.bf16.mxu0 0
    %1642 = vmatpush1.bf16.msra.mxu0 0
    %1643 = vmatprep.subr.bf16.mxu0 0
    %1644 = vmatpush1.bf16.msra.mxu0 0
    %1645 = vmatprep.subr.bf16.mxu0 0
    %1646 = vmatpush1.bf16.msra.mxu0 0
    %1647 = vmatprep.subr.bf16.mxu0 0
    %1648 = vmatpush1.bf16.msra.mxu0 0
    %1649 = vmatprep.subr.bf16.mxu0 0
    %1650 = vmatpush1.bf16.msra.mxu0 0
    %1651 = vmatprep.mubr.bf16.mxu0 0
    %1652 = vmatmul.mubr.bf16.gmra.mrb[0].mxu0 %v1218
    %v1653 = vpop.f32.mrb[0].mxu0
    %v1654 = vadd.f32 %v1614, %v1653
    %v1655 = vpop.f32.mrb[0].mxu0
    %v1656 = vpop.f32.mrb[0].mxu0
    %v1657 = vpop.f32.mrb[0].mxu0
    %1658 = vdwg.mxu0
    %v1659 = vadd.f32 %v1213, %v1654
    %v1660 = vpack.c.bf16 %v555, %v555
    %v1661 = vpack.c.bf16 %v556, %v556
    %v1662 = vpack.c.bf16 %v557, %v557
    %v1663 = vld [vmem:[#allocation16 + $0x300] sm:$0xf]
    %v1664 = vld [vmem:[#allocation16 + $0x304] sm:$0xf]
    %v1665 = vld [vmem:[#allocation16 + $0x308] sm:$0xf]
    %v1666 = vld [vmem:[#allocation16 + $0x30c] sm:$0xf]
    %v1667 = vld [vmem:[#allocation16 + $0x310] sm:$0xf]
    %v1668 = vld [vmem:[#allocation16 + $0x314] sm:$0xf]
    %v1669 = vld [vmem:[#allocation16 + $0x318] sm:$0xf]
    %v1670 = vld [vmem:[#allocation16 + $0x31c] sm:$0xf]
    %v1671 = vld [vmem:[#allocation16 + $0x320] sm:$0xf]
    %v1672 = vld [vmem:[#allocation16 + $0x324] sm:$0xf]
    %v1673 = vld [vmem:[#allocation16 + $0x328] sm:$0xf]
    %v1674 = vld [vmem:[#allocation16 + $0x32c] sm:$0xf]
    %v1675 = vld [vmem:[#allocation16 + $0x330] sm:$0xf]
    %v1676 = vld [vmem:[#allocation16 + $0x334] sm:$0xf]
    %v1677 = vld [vmem:[#allocation16 + $0x338] sm:$0xf]
    %v1678 = vld [vmem:[#allocation16 + $0x33c] sm:$0xf]
    %v1679 = vld [vmem:[#allocation16 + $0x340] sm:$0xf]
    %v1680 = vld [vmem:[#allocation16 + $0x344] sm:$0xf]
    %v1681 = vld [vmem:[#allocation16 + $0x348] sm:$0xf]
    %v1682 = vld [vmem:[#allocation16 + $0x34c] sm:$0xf]
    %v1683 = vld [vmem:[#allocation16 + $0x350] sm:$0xf]
    %v1684 = vld [vmem:[#allocation16 + $0x354] sm:$0xf]
    %v1685 = vld [vmem:[#allocation16 + $0x358] sm:$0xf]
    %v1686 = vld [vmem:[#allocation16 + $0x35c] sm:$0xf]
    %v1687 = vld [vmem:[#allocation16 + $0x360] sm:$0xf]
    %v1688 = vld [vmem:[#allocation16 + $0x364] sm:$0xf]
    %v1689 = vld [vmem:[#allocation16 + $0x368] sm:$0xf]
    %v1690 = vld [vmem:[#allocation16 + $0x36c] sm:$0xf]
    %v1691 = vld [vmem:[#allocation16 + $0x370] sm:$0xf]
    %v1692 = vld [vmem:[#allocation16 + $0x374] sm:$0xf]
    %v1693 = vld [vmem:[#allocation16 + $0x378] sm:$0xf]
    %v1694 = vld [vmem:[#allocation16 + $0x37c] sm:$0xf]
    %v1695 = vld [vmem:[#allocation16 + $0x380] sm:$0xf]
    %v1696 = vld [vmem:[#allocation16 + $0x384] sm:$0xf]
    %v1697 = vld [vmem:[#allocation16 + $0x388] sm:$0xf]
    %v1698 = vld [vmem:[#allocation16 + $0x38c] sm:$0xf]
    %v1699 = vld [vmem:[#allocation16 + $0x390] sm:$0xf]
    %v1700 = vld [vmem:[#allocation16 + $0x394] sm:$0xf]
    %v1701 = vld [vmem:[#allocation16 + $0x398] sm:$0xf]
    %v1702 = vld [vmem:[#allocation16 + $0x39c] sm:$0xf]
    %v1703 = vld [vmem:[#allocation16 + $0x3a0] sm:$0xf]
    %v1704 = vld [vmem:[#allocation16 + $0x3a4] sm:$0xf]
    %v1705 = vld [vmem:[#allocation16 + $0x3a8] sm:$0xf]
    %v1706 = vld [vmem:[#allocation16 + $0x3ac] sm:$0xf]
    %v1707 = vld [vmem:[#allocation16 + $0x3b0] sm:$0xf]
    %v1708 = vld [vmem:[#allocation16 + $0x3b4] sm:$0xf]
    %v1709 = vld [vmem:[#allocation16 + $0x3b8] sm:$0xf]
    %v1710 = vld [vmem:[#allocation16 + $0x3bc] sm:$0xf]
    %v1759 = vunpack.c.l.b16 %v1663
    %v1760 = vunpack.c.l.b16 %v1664
    %v1761 = vunpack.c.l.b16 %v1665
    %v1762 = vunpack.c.l.b16 %v1666
    %v1763 = vunpack.c.l.b16 %v1667
    %v1764 = vunpack.c.l.b16 %v1668
    %v1765 = vunpack.c.l.b16 %v1669
    %v1766 = vunpack.c.l.b16 %v1670
    %v1767 = vunpack.c.l.b16 %v1671
    %v1768 = vunpack.c.l.b16 %v1672
    %v1769 = vunpack.c.l.b16 %v1673
    %v1770 = vunpack.c.l.b16 %v1674
    %v1771 = vunpack.c.l.b16 %v1675
    %v1772 = vunpack.c.l.b16 %v1676
    %v1773 = vunpack.c.l.b16 %v1677
    %v1774 = vunpack.c.l.b16 %v1678
    %v1775 = vunpack.c.l.b16 %v1679
    %v1776 = vunpack.c.l.b16 %v1680
    %v1777 = vunpack.c.l.b16 %v1681
    %v1778 = vunpack.c.l.b16 %v1682
    %v1779 = vunpack.c.l.b16 %v1683
    %v1780 = vunpack.c.l.b16 %v1684
    %v1781 = vunpack.c.l.b16 %v1685
    %v1782 = vunpack.c.l.b16 %v1686
    %v1783 = vunpack.c.l.b16 %v1687
    %v1784 = vunpack.c.l.b16 %v1688
    %v1785 = vunpack.c.l.b16 %v1689
    %v1786 = vunpack.c.l.b16 %v1690
    %v1787 = vunpack.c.l.b16 %v1691
    %v1788 = vunpack.c.l.b16 %v1692
    %v1789 = vunpack.c.l.b16 %v1693
    %v1790 = vunpack.c.l.b16 %v1694
    %v1791 = vunpack.c.l.b16 %v1695
    %v1792 = vunpack.c.l.b16 %v1696
    %v1793 = vunpack.c.l.b16 %v1697
    %v1794 = vunpack.c.l.b16 %v1698
    %v1795 = vunpack.c.l.b16 %v1699
    %v1796 = vunpack.c.l.b16 %v1700
    %v1797 = vunpack.c.l.b16 %v1701
    %v1798 = vunpack.c.l.b16 %v1702
    %v1799 = vunpack.c.l.b16 %v1703
    %v1800 = vunpack.c.l.b16 %v1704
    %v1801 = vunpack.c.l.b16 %v1705
    %v1802 = vunpack.c.l.b16 %v1706
    %v1803 = vunpack.c.l.b16 %v1707
    %v1804 = vunpack.c.l.b16 %v1708
    %v1805 = vunpack.c.l.b16 %v1709
    %v1806 = vunpack.c.l.b16 %v1710
    %v1807 = vpack.c.b16 %v1760, %v1759
    %v1808 = vpack.c.b16 %v1762, %v1761
    %v1809 = vpack.c.b16 %v1764, %v1763
    %v1810 = vpack.c.b16 %v1766, %v1765
    %v1811 = vpack.c.b16 %v1768, %v1767
    %v1812 = vpack.c.b16 %v1770, %v1769
    %v1813 = vpack.c.b16 %v1772, %v1771
    %v1814 = vpack.c.b16 %v1774, %v1773
    %v1815 = vpack.c.b16 %v1776, %v1775
    %v1816 = vpack.c.b16 %v1778, %v1777
    %v1817 = vpack.c.b16 %v1780, %v1779
    %v1818 = vpack.c.b16 %v1782, %v1781
    %v1819 = vpack.c.b16 %v1784, %v1783
    %v1820 = vpack.c.b16 %v1786, %v1785
    %v1821 = vpack.c.b16 %v1788, %v1787
    %v1822 = vpack.c.b16 %v1790, %v1789
    %v1823 = vpack.c.b16 %v1792, %v1791
    %v1824 = vpack.c.b16 %v1794, %v1793
    %v1825 = vpack.c.b16 %v1796, %v1795
    %v1826 = vpack.c.b16 %v1798, %v1797
    %v1827 = vpack.c.b16 %v1800, %v1799
    %v1828 = vpack.c.b16 %v1802, %v1801
    %v1829 = vpack.c.b16 %v1804, %v1803
    %v1830 = vpack.c.b16 %v1806, %v1805
    %1855 = vmatprep.subr.bf16.mxu0 0
    %1856 = vmatpush1.bf16.msra.mxu0 %v1807
    %1857 = vmatprep.subr.bf16.mxu0 0
    %1858 = vmatpush1.bf16.msra.mxu0 %v1808
    %1859 = vmatprep.subr.bf16.mxu0 0
    %1860 = vmatpush1.bf16.msra.mxu0 %v1809
    %1861 = vmatprep.subr.bf16.mxu0 0
    %1862 = vmatpush1.bf16.msra.mxu0 %v1810
    %1863 = vmatprep.subr.bf16.mxu0 0
    %1864 = vmatpush1.bf16.msra.mxu0 %v1811
    %1865 = vmatprep.subr.bf16.mxu0 0
    %1866 = vmatpush1.bf16.msra.mxu0 %v1812
    %1867 = vmatprep.subr.bf16.mxu0 0
    %1868 = vmatpush1.bf16.msra.mxu0 %v1813
    %1869 = vmatprep.subr.bf16.mxu0 0
    %1870 = vmatpush1.bf16.msra.mxu0 %v1814
    %1871 = vmatprep.subr.bf16.mxu0 0
    %1872 = vmatpush1.bf16.msra.mxu0 %v1815
    %1873 = vmatprep.subr.bf16.mxu0 0
    %1874 = vmatpush1.bf16.msra.mxu0 %v1816
    %1875 = vmatprep.subr.bf16.mxu0 0
    %1876 = vmatpush1.bf16.msra.mxu0 %v1817
    %1877 = vmatprep.subr.bf16.mxu0 0
    %1878 = vmatpush1.bf16.msra.mxu0 %v1818
    %1879 = vmatprep.subr.bf16.mxu0 0
    %1880 = vmatpush1.bf16.msra.mxu0 %v1819
    %1881 = vmatprep.subr.bf16.mxu0 0
    %1882 = vmatpush1.bf16.msra.mxu0 %v1820
    %1883 = vmatprep.subr.bf16.mxu0 0
    %1884 = vmatpush1.bf16.msra.mxu0 %v1821
    %1885 = vmatprep.subr.bf16.mxu0 0
    %1886 = vmatpush1.bf16.msra.mxu0 %v1822
    %1887 = vmatprep.mubr.bf16.mxu0 %v1661
    %1888 = vmatmul.mubr.bf16.gmra.mrb[0].mxu0 %v1660
    %v1889 = vpop.f32.mrb[0].mxu0
    %v1890 = vadd.f32 0.0, %v1889
    %v1891 = vpop.f32.mrb[0].mxu0
    %v1892 = vpop.f32.mrb[0].mxu0
    %v1893 = vpop.f32.mrb[0].mxu0
    %1894 = vdwg.mxu0
    %1895 = vmatprep.subr.bf16.mxu0 0
    %1896 = vmatpush1.bf16.msra.mxu0 %v1823
    %1897 = vmatprep.subr.bf16.mxu0 0
    %1898 = vmatpush1.bf16.msra.mxu0 %v1824
    %1899 = vmatprep.subr.bf16.mxu0 0
    %1900 = vmatpush1.bf16.msra.mxu0 %v1825
    %1901 = vmatprep.subr.bf16.mxu0 0
    %1902 = vmatpush1.bf16.msra.mxu0 %v1826
    %1903 = vmatprep.subr.bf16.mxu0 0
    %1904 = vmatpush1.bf16.msra.mxu0 %v1827
    %1905 = vmatprep.subr.bf16.mxu0 0
    %1906 = vmatpush1.bf16.msra.mxu0 %v1828
    %1907 = vmatprep.subr.bf16.mxu0 0
    %1908 = vmatpush1.bf16.msra.mxu0 %v1829
    %1909 = vmatprep.subr.bf16.mxu0 0
    %1910 = vmatpush1.bf16.msra.mxu0 %v1830
    %1911 = vmatprep.subr.bf16.mxu0 0
    %1912 = vmatpush1.bf16.msra.mxu0 0
    %1913 = vmatprep.subr.bf16.mxu0 0
    %1914 = vmatpush1.bf16.msra.mxu0 0
    %1915 = vmatprep.subr.bf16.mxu0 0
    %1916 = vmatpush1.bf16.msra.mxu0 0
    %1917 = vmatprep.subr.bf16.mxu0 0
    %1918 = vmatpush1.bf16.msra.mxu0 0
    %1919 = vmatprep.subr.bf16.mxu0 0
    %1920 = vmatpush1.bf16.msra.mxu0 0
    %1921 = vmatprep.subr.bf16.mxu0 0
    %1922 = vmatpush1.bf16.msra.mxu0 0
    %1923 = vmatprep.subr.bf16.mxu0 0
    %1924 = vmatpush1.bf16.msra.mxu0 0
    %1925 = vmatprep.subr.bf16.mxu0 0
    %1926 = vmatpush1.bf16.msra.mxu0 0
    %1927 = vmatprep.mubr.bf16.mxu0 0
    %1928 = vmatmul.mubr.bf16.gmra.mrb[0].mxu0 %v1662
    %v1929 = vpop.f32.mrb[0].mxu0
    %v1930 = vadd.f32 %v1890, %v1929
    %v1931 = vpop.f32.mrb[0].mxu0
    %v1932 = vpop.f32.mrb[0].mxu0
    %v1933 = vpop.f32.mrb[0].mxu0
    %1934 = vdwg.mxu0
    %v1935 = vadd.f32 %v1659, %v1930
    %v1936 = vld [vmem:[%s2] sm:$0xff]
    %v1937 = vld [vmem:[#allocation11] sm:$0x1]
    %1939 = vset.pattern.permute.xlu0 0
    %1940 = vperm.xlu0 %1939, %v1936
    %v1941 = vpop.permute.xlu0 %1940
    %v1944 = vlaneseq
    %v1945 = vshrl.u32 %v1944, 7
    %v1946 = vsub.s32 0, %v1945
    %v1947 = vrot.slane %v1937, %v1946
    %v1949 = vmul.f32 %v1941, %v1947
    %v1950 = vadd.f32 %v1935, %v1949
    %v1951 = vld [vmem:[#allocation17] sm:$0x1]
    %v1953 = vlaneseq
    %v1954 = vshrl.u32 %v1953, 7
    %v1955 = vsub.s32 0, %v1954
    %v1956 = vrot.slane %v1951, %v1955
    %v1958 = vadd.f32 %v1950, %v1956
    %v1959 = vmax.f32 %v1958, 0.0
    %v1960 = vpack.c.bf16 %v1959, %v1959
    %v1961 = vld [vmem:[%s17] sm:$0xf]
    %v1962 = vld [vmem:[%s17 + $0x4] sm:$0xf]
    %v1963 = vld [vmem:[%s17 + $0x8] sm:$0xf]
    %v1964 = vld [vmem:[%s17 + $0xc] sm:$0xf]
    %v1965 = vld [vmem:[%s17 + $0x10] sm:$0xf]
    %v1966 = vld [vmem:[%s17 + $0x14] sm:$0xf]
    %v1967 = vld [vmem:[%s17 + $0x18] sm:$0xf]
    %v1968 = vld [vmem:[%s17 + $0x1c] sm:$0xf]
    %v1969 = vld [vmem:[%s17 + $0x20] sm:$0xf]
    %v1970 = vld [vmem:[%s17 + $0x24] sm:$0xf]
    %v1971 = vld [vmem:[%s17 + $0x28] sm:$0xf]
    %v1972 = vld [vmem:[%s17 + $0x2c] sm:$0xf]
    %v1973 = vld [vmem:[%s17 + $0x30] sm:$0xf]
    %v1974 = vld [vmem:[%s17 + $0x34] sm:$0xf]
    %v1975 = vld [vmem:[%s17 + $0x38] sm:$0xf]
    %v1976 = vld [vmem:[%s17 + $0x3c] sm:$0xf]
    %v1977 = vld [vmem:[%s18] sm:$0x1]
    %v1979 = vlaneseq
    %v1980 = vshrl.u32 %v1979, 7
    %v1981 = vsub.s32 0, %v1980
    %v1982 = vrot.slane %v1977, %v1981
    %v2000 = vunpack.c.l.b16 %v1961
    %v2001 = vunpack.c.l.b16 %v1962
    %v2002 = vunpack.c.l.b16 %v1963
    %v2003 = vunpack.c.l.b16 %v1964
    %v2004 = vunpack.c.l.b16 %v1965
    %v2005 = vunpack.c.l.b16 %v1966
    %v2006 = vunpack.c.l.b16 %v1967
    %v2007 = vunpack.c.l.b16 %v1968
    %v2008 = vunpack.c.l.b16 %v1969
    %v2009 = vunpack.c.l.b16 %v1970
    %v2010 = vunpack.c.l.b16 %v1971
    %v2011 = vunpack.c.l.b16 %v1972
    %v2012 = vunpack.c.l.b16 %v1973
    %v2013 = vunpack.c.l.b16 %v1974
    %v2014 = vunpack.c.l.b16 %v1975
    %v2015 = vunpack.c.l.b16 %v1976
    %v2016 = vpack.c.b16 %v2001, %v2000
    %v2017 = vpack.c.b16 %v2003, %v2002
    %v2018 = vpack.c.b16 %v2005, %v2004
    %v2019 = vpack.c.b16 %v2007, %v2006
    %v2020 = vpack.c.b16 %v2009, %v2008
    %v2021 = vpack.c.b16 %v2011, %v2010
    %v2022 = vpack.c.b16 %v2013, %v2012
    %v2023 = vpack.c.b16 %v2015, %v2014
    %2032 = vmatprep.subr.bf16.mxu0 0
    %2033 = vmatpush1.bf16.msra.mxu0 %v2016
    %2034 = vmatprep.subr.bf16.mxu0 0
    %2035 = vmatpush1.bf16.msra.mxu0 %v2017
    %2036 = vmatprep.subr.bf16.mxu0 0
    %2037 = vmatpush1.bf16.msra.mxu0 %v2018
    %2038 = vmatprep.subr.bf16.mxu0 0
    %2039 = vmatpush1.bf16.msra.mxu0 %v2019
    %2040 = vmatprep.subr.bf16.mxu0 0
    %2041 = vmatpush1.bf16.msra.mxu0 %v2020
    %2042 = vmatprep.subr.bf16.mxu0 0
    %2043 = vmatpush1.bf16.msra.mxu0 %v2021
    %2044 = vmatprep.subr.bf16.mxu0 0
    %2045 = vmatpush1.bf16.msra.mxu0 %v2022
    %2046 = vmatprep.subr.bf16.mxu0 0
    %2047 = vmatpush1.bf16.msra.mxu0 %v2023
    %2048 = vmatprep.subr.bf16.mxu0 0
    %2049 = vmatpush1.bf16.msra.mxu0 0
    %2050 = vmatprep.subr.bf16.mxu0 0
    %2051 = vmatpush1.bf16.msra.mxu0 0
    %2052 = vmatprep.subr.bf16.mxu0 0
    %2053 = vmatpush1.bf16.msra.mxu0 0
    %2054 = vmatprep.subr.bf16.mxu0 0
    %2055 = vmatpush1.bf16.msra.mxu0 0
    %2056 = vmatprep.subr.bf16.mxu0 0
    %2057 = vmatpush1.bf16.msra.mxu0 0
    %2058 = vmatprep.subr.bf16.mxu0 0
    %2059 = vmatpush1.bf16.msra.mxu0 0
    %2060 = vmatprep.subr.bf16.mxu0 0
    %2061 = vmatpush1.bf16.msra.mxu0 0
    %2062 = vmatprep.subr.bf16.mxu0 0
    %2063 = vmatpush1.bf16.msra.mxu0 0
    %2064 = vmatprep.mubr.bf16.mxu0 0
    %2065 = vmatmul.mubr.bf16.gmra.mrb[0].mxu0 %v1960
    %v2066 = vpop.f32.mrb[0].mxu0
    %v2067 = vadd.f32 %v1982, %v2066
    %v2068 = vpop.f32.mrb[0].mxu0
    %v2069 = vpop.f32.mrb[0].mxu0
    %v2070 = vpop.f32.mrb[0].mxu0
    %2071 = vdwg.mxu0
    %2072 = vst [vmem:[#allocation19] sm:$0xff] %v2067
    // Predicated region
    $region118: #{tpu_custom_call.1} parent=1 // pred_check
      _
    $region119: #{tpu_custom_call.1} parent=1 // pred_check_branch
      %2074 = sbr.rel (0) target = $region121
    $region120: #{tpu_custom_call.1} parent=1 // pred_region
      %s2076 = ssub.s32 128, 128
      %2077 = vsyncadd [#allocation4], %s2076
      %s2079 = sshll.u32 [#allocation19], 4
      %s2080 = int_to_ptr.vmem [resolvable:$true] %s2079
      %2082 = dma.vmem_to_hbm [thread:$0]  %s2080, 128, %s19, [#allocation4]
    $region121: #{tpu_custom_call.1} parent=1 // pred_fallthru
      _
    // Predicated region
    $region122: #{tpu_custom_call.1} parent=1 // pred_check
      _
    $region123: #{tpu_custom_call.1} parent=1 // pred_check_branch
      %2084 = sbr.rel (0) target = $region125
    $region124: #{tpu_custom_call.1} parent=1 // pred_region
      %2085 = dma.done [#allocation4], 128
    $region125: #{tpu_custom_call.1} parent=1 // pred_fallthru
      _
    %2086 = vsyncpa [#allocation3], 1
    %2087 = vsyncpa [#allocation6], 1
    %2088 = vsyncpa [#allocation9], 1
    %2089 = vsyncpa [#allocation12], 1
    %2090 = vsyncpa [#allocation15], 1
    %2091 = vsyncpa [#allocation18], 1
    %2092 = vsyncpa [#allocation4], 1

</llo_original>
